<compile_context>
chip_gen: v5e
topology: v5e:2x2
jax: 0.10.0
libtpu: 0.0.40
codegen_flags: <defaults>
</compile_context>

<pallas_src>
import functools

import jax
import jax.numpy as jnp
from jax import lax
from jax.experimental import pallas as pl
from jax.experimental.pallas import tpu as pltpu


def _round_up(x, m):
    return ((x + m - 1) // m) * m


# ----------------------------------------------------------------------------
# Fused multi-layer LSTM kernel (single grid step per batch tile)
# ----------------------------------------------------------------------------
def _lstm_stack_kernel(x_ref, wih0_ref, wihr_ref, whh_ref, b_ref, out_ref,
                       gates_ref, act_ref, *, num_layers, unroll):
    T, Bt, E = x_ref.shape
    H = act_ref.shape[-1]
    G4 = 4 * H
    TB = T * Bt

    for l in range(num_layers):
        # ---- (1) Hoisted input-to-hidden projection for the whole sequence:
        #      ONE (T*Bt, in) @ (in, 4H) matmul per layer, bias folded in.
        #      Result is lane-dense (last dim 4H = multiple of 128 for H>=32).
        if l == 0:
            x_flat = x_ref[...].reshape(TB, E)
            wih = wih0_ref[...]                      # (E, 4H)
        else:
            x_flat = act_ref[...].reshape(TB, H)     # previous layer's output
            wih = wihr_ref[l - 1]                    # (H, 4H)
        ig = jnp.dot(x_flat, wih, preferred_element_type=jnp.float32) + b_ref[l]
        gates_ref[...] = ig.reshape(T, Bt, G4)

        # ---- (2) Time recurrence: ONE fused h @ (H, 4H) MXU push per step,
        #      plus the precomputed gates.  h/c are fori_loop carries (vregs);
        #      the recurrent weight is hoisted into vregs before the loop.
        whh_l = whh_ref[l]                           # (H, 4H)

        def step(t, carry):
            h, c = carry
            z = gates_ref[t] + jnp.dot(h, whh_l,
                                       preferred_element_type=jnp.float32)
            i = jax.nn.sigmoid(z[:, 0:H])
            f = jax.nn.sigmoid(z[:, H:2 * H])
            g = jnp.tanh(z[:, 2 * H:3 * H])
            o = jax.nn.sigmoid(z[:, 3 * H:4 * H])
            c_new = f * c + i * g
            h_new = o * jnp.tanh(c_new)
            act_ref[t] = h_new                       # VMEM scratch store
            return h_new, c_new

        h0 = jnp.zeros((Bt, H), jnp.float32)
        c0 = jnp.zeros((Bt, H), jnp.float32)
        lax.fori_loop(0, T, step, (h0, c0), unroll=unroll)

    # Single bulk store of the last layer's output slab (one writeback DMA).
    out_ref[...] = act_ref[...].astype(out_ref.dtype)


def lstm_stack(x_tbe, wih0, wih_rest, whh, bias, b_tile):
    """x_tbe: (T, Bp, E) f32, Bp a multiple of b_tile.
    wih0: (E, 4H); wih_rest: (max(L-1,1), H, 4H); whh: (L, H, 4H);
    bias: (L, 1, 4H)  (b_ih + b_hh fused, PyTorch gate order [i|f|g|o]).
    Returns (T, Bp, H)."""
    T, Bp, E = x_tbe.shape
    L = whh.shape[0]
    H = whh.shape[1]
    assert Bp % b_tile == 0
    NB = Bp // b_tile
    unroll = True if T <= 16 else 8   # guard instruction count / vreg pressure

    kernel = functools.partial(_lstm_stack_kernel, num_layers=L, unroll=unroll)
    return pl.pallas_call(
        kernel,
        out_shape=jax.ShapeDtypeStruct((T, Bp, H), jnp.float32),
        grid=(NB,),
        in_specs=[
            pl.BlockSpec((T, b_tile, E), lambda nb: (0, nb, 0)),
            pl.BlockSpec(wih0.shape, lambda nb: (0, 0)),
            pl.BlockSpec(wih_rest.shape, lambda nb: (0, 0, 0)),
            pl.BlockSpec(whh.shape, lambda nb: (0, 0, 0)),
            pl.BlockSpec(bias.shape, lambda nb: (0, 0, 0)),
        ],
        out_specs=pl.BlockSpec((T, b_tile, H), lambda nb: (0, nb, 0)),
        scratch_shapes=[
            pltpu.VMEM((T, b_tile, 4 * H), jnp.float32),  # fused precomputed gates
            pltpu.VMEM((T, b_tile, H), jnp.float32),      # inter-layer activations
        ],
        compiler_params=pltpu.CompilerParams(
            # batch tiles are independent -> schedulable across TCs
            dimension_semantics=("parallel",),
            vmem_limit_bytes=64 * 1024 * 1024,
        ),
    )(x_tbe, wih0, wih_rest, whh, bias)


# ----------------------------------------------------------------------------
# fc_out kernel: tiled (M, V) matmul + bias, weight-tile-outer grid ordering
# ----------------------------------------------------------------------------
def _fc_kernel(x_ref, w_ref, b_ref, o_ref):
    o_ref[...] = (
        jnp.dot(x_ref[...], w_ref[...], preferred_element_type=jnp.float32)
        + b_ref[...]
    )


def fc_out(x_2d, w_t_p, b_p, v):
    """x_2d: (M, H); w_t_p: (H, Vp) pre-padded; b_p: (1, Vp) pre-padded.
    Returns (M, v)."""
    M, H = x_2d.shape
    Vp = w_t_p.shape[1]
    # largest lane-dense vocab tile dividing Vp (Vp is a multiple of 128)
    tn = next(t for t in (2048, 1024, 512, 256, 128) if Vp % t == 0)
    tm = min(256, _round_up(M, 8))
    Mp = _round_up(M, tm)
    x_p = jnp.pad(x_2d, ((0, Mp - M), (0, 0))) if Mp != M else x_2d

    out = pl.pallas_call(
        _fc_kernel,
        out_shape=jax.ShapeDtypeStruct((Mp, Vp), jnp.float32),
        # vocab (weight) axis outer: each (H, tn) weight tile is DMA'd once and
        # reused across all M tiles; only the small x tile is re-streamed.
        grid=(Vp // tn, Mp // tm),
        in_specs=[
            pl.BlockSpec((tm, H), lambda j, i: (i, 0)),
            pl.BlockSpec((H, tn), lambda j, i: (0, j)),
            pl.BlockSpec((1, tn), lambda j, i: (0, j)),
        ],
        out_specs=pl.BlockSpec((tm, tn), lambda j, i: (i, j)),
        compiler_params=pltpu.CompilerParams(
            dimension_semantics=("parallel", "parallel"),
        ),
    )(x_p, w_t_p, b_p)
    return out[:M, :v]


# ----------------------------------------------------------------------------
# Decoder forward (glue in plain JAX, hot path in Pallas)
# ----------------------------------------------------------------------------
@jax.jit
def decoder_forward(params, img_features, captions):
    # captions: (B, L) int32 ; img_features: (B, E)
    caps = captions[:, :-1]                                        # (B, L-1)
    # Embedding lookup is a gather; kept in JAX glue (padding_idx row zeroed).
    emb = jnp.take(params["embedding"], caps, axis=0)              # (B, L-1, E)
    # dropout -> identity (deterministic / eval mode)
    x = jnp.concatenate([img_features[:, None, :], emb], axis=1)   # (B, T, E)

    x = jnp.transpose(x, (1, 0, 2)).astype(jnp.float32)            # (T, B, E)
    T, B, E = x.shape
    B_TILE = min(256, _round_up(B, 8))                             # adaptive tile
    Bp = _round_up(B, B_TILE)
    if Bp != B:
        x = jnp.pad(x, ((0, 0), (0, Bp - B), (0, 0)))

    out = lstm_stack(x, params["wih0"], params["wih_rest"],
                     params["whh"], params["bias"], B_TILE)        # (T, Bp, H)
    H = out.shape[-1]
    # Small H-wide transpose (NOT the V-wide logits tensor): logits then come
    # out already (B, T, V)-ordered, no full-logits transpose needed.
    out_bth = jnp.transpose(out[:, :B, :], (1, 0, 2))              # (B, T, H)

    V = params["embedding"].shape[0]
    logits = fc_out(out_bth.reshape(B * T, H),
                    params["fc_w_t"], params["fc_b"], V)           # (B*T, V)
    return logits.reshape(B, T, V)


# ----------------------------------------------------------------------------
# Pure-JAX reference (same math) for validation
# ----------------------------------------------------------------------------
def decoder_forward_ref(params, img_features, captions):
    caps = captions[:, :-1]
    emb = jnp.take(params["embedding"], caps, axis=0)
    x = jnp.concatenate([img_features[:, None, :], emb], axis=1).astype(jnp.float32)
    B, T, _ = x.shape
    L = params["whh"].shape[0]
    H = params["whh"].shape[1]
    for l in range(L):
        wih = params["wih0"] if l == 0 else params["wih_rest"][l - 1]  # (in, 4H)
        whh = params["whh"][l]                                          # (H, 4H)
        b = params["bias"][l]                                           # (1, 4H)
        h = jnp.zeros((B, H), jnp.float32)
        c = jnp.zeros((B, H), jnp.float32)
        outs = []
        for t in range(T):
            xt = x[:, t, :]
            z = xt @ wih + h @ whh + b
            i = jax.nn.sigmoid(z[:, 0:H])
            f = jax.nn.sigmoid(z[:, H:2 * H])
            g = jnp.tanh(z[:, 2 * H:3 * H])
            o = jax.nn.sigmoid(z[:, 3 * H:4 * H])
            c = f * c + i * g
            h = o * jnp.tanh(c)
            outs.append(h)
        x = jnp.stack(outs, axis=1)
    V = params["embedding"].shape[0]
    logits = x @ params["fc_w_t"] + params["fc_b"]
    return logits[..., :V]


# ----------------------------------------------------------------------------
# Deterministic parameter init (shapes per nn.Embedding / nn.LSTM / nn.Linear),
# converted to the gate-concatenated layouts the kernels expect.
# ----------------------------------------------------------------------------
def init_params(key, output_dim, embed_dim, hidden_dim, num_layers, padding_idx):
    keys = jax.random.split(key, 1 + 4 * num_layers + 2)
    k_iter = iter(keys)

    emb = jax.random.normal(next(k_iter), (output_dim, embed_dim), jnp.float32)
    emb = emb.at[padding_idx].set(0.0)       # nn.Embedding zeroes the padding row

    H = hidden_dim
    bound = 1.0 / (hidden_dim ** 0.5)
    wih0 = None
    wih_rest, whh_all, bias_all = [], [], []
    in_dim = embed_dim
    for l in range(num_layers):
        w_ih = jax.random.uniform(next(k_iter), (4 * H, in_dim),
                                  jnp.float32, -bound, bound)
        w_hh = jax.random.uniform(next(k_iter), (4 * H, H),
                                  jnp.float32, -bound, bound)
        b_ih = jax.random.uniform(next(k_iter), (4 * H,),
                                  jnp.float32, -bound, bound)
        b_hh = jax.random.uniform(next(k_iter), (4 * H,),
                                  jnp.float32, -bound, bound)
        # PyTorch gate order along the 4H axis is [i, f, g, o]; keep it
        # concatenated so a single (in, 4H) matmul computes all gates.
        w_ih_cat = w_ih.T                                  # (in, 4H)
        w_hh_cat = w_hh.T                                  # (H, 4H)
        b_cat = (b_ih + b_hh)[None, :]                     # (1, 4H)
        if l == 0:
            wih0 = w_ih_cat
        else:
            wih_rest.append(w_ih_cat)
        whh_all.append(w_hh_cat)
        bias_all.append(b_cat)
        in_dim = H

    wih_rest_arr = (jnp.stack(wih_rest) if wih_rest
                    else jnp.zeros((1, H, 4 * H), jnp.float32))  # unused dummy

    fc_bound = 1.0 / (hidden_dim ** 0.5)
    fc_w = jax.random.uniform(next(k_iter), (output_dim, hidden_dim),
                              jnp.float32, -fc_bound, fc_bound)
    fc_b = jax.random.uniform(next(k_iter), (output_dim,),
                              jnp.float32, -fc_bound, fc_bound)

    # Pre-pad fc weights/bias to a lane-dense vocab width at init time (no
    # in-jit weight copies on every forward).
    Vp = _round_up(output_dim, 128)
    fc_w_t = jnp.pad(fc_w.T, ((0, 0), (0, Vp - output_dim)))   # (H, Vp)
    fc_b_p = jnp.pad(fc_b, (0, Vp - output_dim))[None, :]      # (1, Vp)

    return {
        "embedding": emb,
        "wih0": wih0,                    # (E, 4H)
        "wih_rest": wih_rest_arr,        # (max(L-1,1), H, 4H)
        "whh": jnp.stack(whh_all),       # (L, H, 4H)
        "bias": jnp.stack(bias_all),     # (L, 1, 4H)
        "fc_w_t": fc_w_t,                # (H, Vp)  pre-padded
        "fc_b": fc_b_p,                  # (1, Vp)  pre-padded
    }


if __name__ == "__main__":
    # small config consistent with the module
    output_dim = 50      # vocab size
    embed_dim = 32
    hidden_dim = 32
    num_layers = 2
    dropout = 0.5        # identity in this deterministic (eval) implementation
    padding_idx = 0
    B, L = 2, 8          # batch, caption length  -> sequence length T = L

    key = jax.random.PRNGKey(0)
    k_param, k_img, k_cap = jax.random.split(key, 3)
    params = init_params(k_param, output_dim, embed_dim, hidden_dim,
                         num_layers, padding_idx)

    img_features = jax.random.normal(k_img, (B, embed_dim), jnp.float32)
    captions = jax.random.randint(k_cap, (B, L), 0, output_dim, jnp.int32)

    out = decoder_forward(params, img_features, captions)
    out = jax.block_until_ready(out)
    assert out.shape == (B, L, output_dim), out.shape

    ref = decoder_forward_ref(params, img_features, captions)
    err = float(jnp.max(jnp.abs(out - ref)))
    assert err < 2e-4, err

    # TODO(synk): dropout is treated as identity (eval mode); training-mode
    # stochastic dropout would use pltpu.prng_seed/prng_random_bits in-kernel.
    print("KERNEL_OK")
</pallas_src>

<mosaic_0001>
module attributes {stable_mosaic.version = 11 : i64} {
  func.func @_fc_kernel(%arg0: i32, %arg1: i32, %arg2: memref<16x32xf32, #tpu.memory_space<vmem>>, %arg3: memref<32x128xf32, #tpu.memory_space<vmem>>, %arg4: memref<1x128xf32, #tpu.memory_space<vmem>>, %arg5: memref<16x128xf32, #tpu.memory_space<vmem>>) attributes {dimension_semantics = [#tpu.dimension_semantics<parallel>, #tpu.dimension_semantics<parallel>], iteration_bounds = array<i64: 1, 1>, scalar_prefetch = 0 : i64, scratch_operands = 0 : i64, tpu.core_type = #tpu.core_type<tc>, window_params = [{transform_indices = @transform_0, window_bounds = array<i64: 16, 32>}, {transform_indices = @transform_1, window_bounds = array<i64: 32, 128>}, {transform_indices = @transform_2, window_bounds = array<i64: 1, 128>}, {transform_indices = @transform_3, window_bounds = array<i64: 16, 128>}]} {
    %c0 = arith.constant 0 : index
    %c0_0 = arith.constant 0 : index
    %0 = vector.load %arg2[%c0, %c0_0] : memref<16x32xf32, #tpu.memory_space<vmem>>, vector<16x32xf32>
    %c0_1 = arith.constant 0 : index
    %c0_2 = arith.constant 0 : index
    %1 = vector.load %arg3[%c0_1, %c0_2] : memref<32x128xf32, #tpu.memory_space<vmem>>, vector<32x128xf32>
    %cst = arith.constant dense<0.000000e+00> : vector<16x128xf32>
    %2 = tpu.matmul %0, %1, %cst {dimension_numbers = #tpu.dot_dimension_numbers<[1], [0], [0], [1], [0, 0, 1, 1], [], []>} : vector<16x32xf32>, vector<32x128xf32>, vector<16x128xf32> -> vector<16x128xf32>
    %c0_3 = arith.constant 0 : index
    %c0_4 = arith.constant 0 : index
    %3 = vector.load %arg4[%c0_3, %c0_4] : memref<1x128xf32, #tpu.memory_space<vmem>>, vector<1x128xf32>
    %4 = vector.broadcast %3 : vector<1x128xf32> to vector<16x128xf32>
    %5 = arith.addf %2, %4 : vector<16x128xf32>
    %c0_5 = arith.constant 0 : index
    %c0_6 = arith.constant 0 : index
    %6 = vector.load %arg5[%c0_5, %c0_6] : memref<16x128xf32, #tpu.memory_space<vmem>>, vector<16x128xf32>
    tpu.vector_store %arg5[%c0_5, %c0_6], %5 {strides = array<i32>} : memref<16x128xf32, #tpu.memory_space<vmem>>, vector<16x128xf32>,
    return
  }
  func.func @transform_0(%arg0: i32, %arg1: i32) -> (i32, i32) {
    %c0_i32 = arith.constant 0 : i32
    %c0_i32_0 = arith.constant 0 : i32
    return %arg1, %c0_i32 : i32, i32
  }
  func.func @transform_1(%arg0: i32, %arg1: i32) -> (i32, i32) {
    %c0_i32 = arith.constant 0 : i32
    %c0_i32_0 = arith.constant 0 : i32
    return %c0_i32, %arg0 : i32, i32
  }
  func.func @transform_2(%arg0: i32, %arg1: i32) -> (i32, i32) {
    %c0_i32 = arith.constant 0 : i32
    %c0_i32_0 = arith.constant 0 : i32
    return %c0_i32, %arg0 : i32, i32
  }
  func.func @transform_3(%arg0: i32, %arg1: i32) -> (i32, i32) {
    %c0_i32 = arith.constant 0 : i32
    return %arg1, %arg0 : i32, i32
  }
}

module attributes {stable_mosaic.version = 11 : i64} {
  func.func @_lstm_stack_kernel(%arg0: i32, %arg1: memref<8x8x32xf32, #tpu.memory_space<vmem>>, %arg2: memref<32x128xf32, #tpu.memory_space<vmem>>, %arg3: memref<1x32x128xf32, #tpu.memory_space<vmem>>, %arg4: memref<2x32x128xf32, #tpu.memory_space<vmem>>, %arg5: memref<2x1x128xf32, #tpu.memory_space<vmem>>, %arg6: memref<8x8x32xf32, #tpu.memory_space<vmem>>, %arg7: memref<8x8x128xf32, #tpu.memory_space<vmem>>, %arg8: memref<8x8x32xf32, #tpu.memory_space<vmem>>) attributes {dimension_semantics = [#tpu.dimension_semantics<parallel>], iteration_bounds = array<i64: 1>, scalar_prefetch = 0 : i64, scratch_operands = 2 : i64, tpu.core_type = #tpu.core_type<tc>, window_params = [{transform_indices = @transform_0, window_bounds = array<i64: 8, 8, 32>}, {pipeline_mode = #tpu.pipeline_mode<synchronous>, transform_indices = @transform_1, window_bounds = array<i64: 32, 128>}, {pipeline_mode = #tpu.pipeline_mode<synchronous>, transform_indices = @transform_2, window_bounds = array<i64: 1, 32, 128>}, {pipeline_mode = #tpu.pipeline_mode<synchronous>, transform_indices = @transform_3, window_bounds = array<i64: 2, 32, 128>}, {pipeline_mode = #tpu.pipeline_mode<synchronous>, transform_indices = @transform_4, window_bounds = array<i64: 2, 1, 128>}, {transform_indices = @transform_5, window_bounds = array<i64: 8, 8, 32>}]} {
    %c0 = arith.constant 0 : index
    %c0_0 = arith.constant 0 : index
    %c0_1 = arith.constant 0 : index
    %0 = vector.load %arg1[%c0, %c0_0, %c0_1] : memref<8x8x32xf32, #tpu.memory_space<vmem>>, vector<8x8x32xf32>
    %1 = vector.shape_cast %0 : vector<8x8x32xf32> to vector<64x32xf32>
    %c0_2 = arith.constant 0 : index
    %c0_3 = arith.constant 0 : index
    %2 = vector.load %arg2[%c0_2, %c0_3] : memref<32x128xf32, #tpu.memory_space<vmem>>, vector<32x128xf32>
    %cst = arith.constant dense<0.000000e+00> : vector<64x128xf32>
    %3 = tpu.matmul %1, %2, %cst {dimension_numbers = #tpu.dot_dimension_numbers<[1], [0], [0], [1], [0, 0, 1, 1], [], []>} : vector<64x32xf32>, vector<32x128xf32>, vector<64x128xf32> -> vector<64x128xf32>
    %c0_4 = arith.constant 0 : index
    %c0_5 = arith.constant 0 : index
    %c0_6 = arith.constant 0 : index
    %4 = vector.load %arg5[%c0_4, %c0_5, %c0_6] : memref<2x1x128xf32, #tpu.memory_space<vmem>>, vector<1x1x128xf32>
    %5 = vector.shape_cast %4 : vector<1x1x128xf32> to vector<1x128xf32>
    %6 = vector.broadcast %5 : vector<1x128xf32> to vector<64x128xf32>
    %7 = arith.addf %3, %6 : vector<64x128xf32>
    %8 = vector.shape_cast %7 : vector<64x128xf32> to vector<8x8x128xf32>
    %c0_7 = arith.constant 0 : index
    %c0_8 = arith.constant 0 : index
    %c0_9 = arith.constant 0 : index
    %9 = vector.load %arg7[%c0_7, %c0_8, %c0_9] : memref<8x8x128xf32, #tpu.memory_space<vmem>>, vector<8x8x128xf32>
    tpu.vector_store %arg7[%c0_7, %c0_8, %c0_9], %8 {strides = array<i32>} : memref<8x8x128xf32, #tpu.memory_space<vmem>>, vector<8x8x128xf32>,
    %c0_10 = arith.constant 0 : index
    %c0_11 = arith.constant 0 : index
    %c0_12 = arith.constant 0 : index
    %10 = vector.load %arg4[%c0_10, %c0_11, %c0_12] : memref<2x32x128xf32, #tpu.memory_space<vmem>>, vector<1x32x128xf32>
    %11 = vector.shape_cast %10 : vector<1x32x128xf32> to vector<32x128xf32>
    %cst_13 = arith.constant 0.000000e+00 : f32
    %12 = vector.broadcast %cst_13 : f32 to vector<8x32xf32>
    %cst_14 = arith.constant 0.000000e+00 : f32
    %13 = vector.broadcast %cst_14 : f32 to vector<8x32xf32>
    %c0_i32 = arith.constant 0 : i32
    %14 = arith.index_cast %c0_i32 : i32 to index
    %c0_15 = arith.constant 0 : index
    %c0_16 = arith.constant 0 : index
    %15 = vector.load %arg7[%14, %c0_15, %c0_16] : memref<8x8x128xf32, #tpu.memory_space<vmem>>, vector<1x8x128xf32>
    %16 = vector.shape_cast %15 : vector<1x8x128xf32> to vector<8x128xf32>
    %cst_17 = arith.constant dense<0.000000e+00> : vector<8x128xf32>
    %17 = tpu.matmul %12, %11, %cst_17 {dimension_numbers = #tpu.dot_dimension_numbers<[1], [0], [0], [1], [0, 0, 1, 1], [], []>} : vector<8x32xf32>, vector<32x128xf32>, vector<8x128xf32> -> vector<8x128xf32>
    %18 = arith.addf %16, %17 : vector<8x128xf32>
    %19 = vector.extract_strided_slice %18 {offsets = [0, 0], sizes = [8, 32], strides = [1, 1]} : vector<8x128xf32> to vector<8x32xf32>
    %20 = arith.negf %19 : vector<8x32xf32>
    %21 = math.exp %20 : vector<8x32xf32>
    %cst_18 = arith.constant 1.000000e+00 : f32
    %22 = vector.broadcast %cst_18 : f32 to vector<8x32xf32>
    %23 = arith.addf %22, %21 : vector<8x32xf32>
    %24 = arith.divf %22, %23 : vector<8x32xf32>
    %25 = vector.extract_strided_slice %18 {offsets = [0, 32], sizes = [8, 32], strides = [1, 1]} : vector<8x128xf32> to vector<8x32xf32>
    %26 = arith.negf %25 : vector<8x32xf32>
    %27 = math.exp %26 : vector<8x32xf32>
    %cst_19 = arith.constant 1.000000e+00 : f32
    %28 = vector.broadcast %cst_19 : f32 to vector<8x32xf32>
    %29 = arith.addf %28, %27 : vector<8x32xf32>
    %30 = arith.divf %28, %29 : vector<8x32xf32>
    %31 = vector.extract_strided_slice %18 {offsets = [0, 64], sizes = [8, 32], strides = [1, 1]} : vector<8x128xf32> to vector<8x32xf32>
    %32 = math.tanh %31 : vector<8x32xf32>
    %33 = vector.extract_strided_slice %18 {offsets = [0, 96], sizes = [8, 32], strides = [1, 1]} : vector<8x128xf32> to vector<8x32xf32>
    %34 = arith.negf %33 : vector<8x32xf32>
    %35 = math.exp %34 : vector<8x32xf32>
    %cst_20 = arith.constant 1.000000e+00 : f32
    %36 = vector.broadcast %cst_20 : f32 to vector<8x32xf32>
    %37 = arith.addf %36, %35 : vector<8x32xf32>
    %38 = arith.divf %36, %37 : vector<8x32xf32>
    %39 = arith.mulf %30, %13 : vector<8x32xf32>
    %40 = arith.mulf %24, %32 : vector<8x32xf32>
    %41 = arith.addf %39, %40 : vector<8x32xf32>
    %42 = math.tanh %41 : vector<8x32xf32>
    %43 = arith.mulf %38, %42 : vector<8x32xf32>
    %44 = arith.index_cast %c0_i32 : i32 to index
    %c0_21 = arith.constant 0 : index
    %c0_22 = arith.constant 0 : index
    %45 = vector.load %arg8[%44, %c0_21, %c0_22] : memref<8x8x32xf32, #tpu.memory_space<vmem>>, vector<1x8x32xf32>
    %46 = vector.shape_cast %45 : vector<1x8x32xf32> to vector<8x32xf32>
    %47 = vector.shape_cast %43 : vector<8x32xf32> to vector<1x8x32xf32>
    tpu.vector_store %arg8[%44, %c0_21, %c0_22], %47 {strides = array<i32>} : memref<8x8x32xf32, #tpu.memory_space<vmem>>, vector<1x8x32xf32>,
    %c1_i32 = arith.constant 1 : i32
    %48 = arith.index_cast %c1_i32 : i32 to index
    %c0_23 = arith.constant 0 : index
    %c0_24 = arith.constant 0 : index
    %49 = vector.load %arg7[%48, %c0_23, %c0_24] : memref<8x8x128xf32, #tpu.memory_space<vmem>>, vector<1x8x128xf32>
    %50 = vector.shape_cast %49 : vector<1x8x128xf32> to vector<8x128xf32>
    %cst_25 = arith.constant dense<0.000000e+00> : vector<8x128xf32>
    %51 = tpu.matmul %43, %11, %cst_25 {dimension_numbers = #tpu.dot_dimension_numbers<[1], [0], [0], [1], [0, 0, 1, 1], [], []>} : vector<8x32xf32>, vector<32x128xf32>, vector<8x128xf32> -> vector<8x128xf32>
    %52 = arith.addf %50, %51 : vector<8x128xf32>
    %53 = vector.extract_strided_slice %52 {offsets = [0, 0], sizes = [8, 32], strides = [1, 1]} : vector<8x128xf32> to vector<8x32xf32>
    %54 = arith.negf %53 : vector<8x32xf32>
    %55 = math.exp %54 : vector<8x32xf32>
    %cst_26 = arith.constant 1.000000e+00 : f32
    %56 = vector.broadcast %cst_26 : f32 to vector<8x32xf32>
    %57 = arith.addf %56, %55 : vector<8x32xf32>
    %58 = arith.divf %56, %57 : vector<8x32xf32>
    %59 = vector.extract_strided_slice %52 {offsets = [0, 32], sizes = [8, 32], strides = [1, 1]} : vector<8x128xf32> to vector<8x32xf32>
    %60 = arith.negf %59 : vector<8x32xf32>
    %61 = math.exp %60 : vector<8x32xf32>
    %cst_27 = arith.constant 1.000000e+00 : f32
    %62 = vector.broadcast %cst_27 : f32 to vector<8x32xf32>
    %63 = arith.addf %62, %61 : vector<8x32xf32>
    %64 = arith.divf %62, %63 : vector<8x32xf32>
    %65 = vector.extract_strided_slice %52 {offsets = [0, 64], sizes = [8, 32], strides = [1, 1]} : vector<8x128xf32> to vector<8x32xf32>
    %66 = math.tanh %65 : vector<8x32xf32>
    %67 = vector.extract_strided_slice %52 {offsets = [0, 96], sizes = [8, 32], strides = [1, 1]} : vector<8x128xf32> to vector<8x32xf32>
    %68 = arith.negf %67 : vector<8x32xf32>
    %69 = math.exp %68 : vector<8x32xf32>
    %cst_28 = arith.constant 1.000000e+00 : f32
    %70 = vector.broadcast %cst_28 : f32 to vector<8x32xf32>
    %71 = arith.addf %70, %69 : vector<8x32xf32>
    %72 = arith.divf %70, %71 : vector<8x32xf32>
    %73 = arith.mulf %64, %41 : vector<8x32xf32>
    %74 = arith.mulf %58, %66 : vector<8x32xf32>
    %75 = arith.addf %73, %74 : vector<8x32xf32>
    %76 = math.tanh %75 : vector<8x32xf32>
    %77 = arith.mulf %72, %76 : vector<8x32xf32>
    %78 = arith.index_cast %c1_i32 : i32 to index
    %c0_29 = arith.constant 0 : index
    %c0_30 = arith.constant 0 : index
    %79 = vector.load %arg8[%78, %c0_29, %c0_30] : memref<8x8x32xf32, #tpu.memory_space<vmem>>, vector<1x8x32xf32>
    %80 = vector.shape_cast %79 : vector<1x8x32xf32> to vector<8x32xf32>
    %81 = vector.shape_cast %77 : vector<8x32xf32> to vector<1x8x32xf32>
    tpu.vector_store %arg8[%78, %c0_29, %c0_30], %81 {strides = array<i32>} : memref<8x8x32xf32, #tpu.memory_space<vmem>>, vector<1x8x32xf32>,
    %c2_i32 = arith.constant 2 : i32
    %82 = arith.index_cast %c2_i32 : i32 to index
    %c0_31 = arith.constant 0 : index
    %c0_32 = arith.constant 0 : index
    %83 = vector.load %arg7[%82, %c0_31, %c0_32] : memref<8x8x128xf32, #tpu.memory_space<vmem>>, vector<1x8x128xf32>
    %84 = vector.shape_cast %83 : vector<1x8x128xf32> to vector<8x128xf32>
    %cst_33 = arith.constant dense<0.000000e+00> : vector<8x128xf32>
    %85 = tpu.matmul %77, %11, %cst_33 {dimension_numbers = #tpu.dot_dimension_numbers<[1], [0], [0], [1], [0, 0, 1, 1], [], []>} : vector<8x32xf32>, vector<32x128xf32>, vector<8x128xf32> -> vector<8x128xf32>
    %86 = arith.addf %84, %85 : vector<8x128xf32>
    %87 = vector.extract_strided_slice %86 {offsets = [0, 0], sizes = [8, 32], strides = [1, 1]} : vector<8x128xf32> to vector<8x32xf32>
    %88 = arith.negf %87 : vector<8x32xf32>
    %89 = math.exp %88 : vector<8x32xf32>
    %cst_34 = arith.constant 1.000000e+00 : f32
    %90 = vector.broadcast %cst_34 : f32 to vector<8x32xf32>
    %91 = arith.addf %90, %89 : vector<8x32xf32>
    %92 = arith.divf %90, %91 : vector<8x32xf32>
    %93 = vector.extract_strided_slice %86 {offsets = [0, 32], sizes = [8, 32], strides = [1, 1]} : vector<8x128xf32> to vector<8x32xf32>
    %94 = arith.negf %93 : vector<8x32xf32>
    %95 = math.exp %94 : vector<8x32xf32>
    %cst_35 = arith.constant 1.000000e+00 : f32
    %96 = vector.broadcast %cst_35 : f32 to vector<8x32xf32>
    %97 = arith.addf %96, %95 : vector<8x32xf32>
    %98 = arith.divf %96, %97 : vector<8x32xf32>
    %99 = vector.extract_strided_slice %86 {offsets = [0, 64], sizes = [8, 32], strides = [1, 1]} : vector<8x128xf32> to vector<8x32xf32>
    %100 = math.tanh %99 : vector<8x32xf32>
    %101 = vector.extract_strided_slice %86 {offsets = [0, 96], sizes = [8, 32], strides = [1, 1]} : vector<8x128xf32> to vector<8x32xf32>
    %102 = arith.negf %101 : vector<8x32xf32>
    %103 = math.exp %102 : vector<8x32xf32>
    %cst_36 = arith.constant 1.000000e+00 : f32
    %104 = vector.broadcast %cst_36 : f32 to vector<8x32xf32>
    %105 = arith.addf %104, %103 : vector<8x32xf32>
    %106 = arith.divf %104, %105 : vector<8x32xf32>
    %107 = arith.mulf %98, %75 : vector<8x32xf32>
    %108 = arith.mulf %92, %100 : vector<8x32xf32>
    %109 = arith.addf %107, %108 : vector<8x32xf32>
    %110 = math.tanh %109 : vector<8x32xf32>
    %111 = arith.mulf %106, %110 : vector<8x32xf32>
    %112 = arith.index_cast %c2_i32 : i32 to index
    %c0_37 = arith.constant 0 : index
    %c0_38 = arith.constant 0 : index
    %113 = vector.load %arg8[%112, %c0_37, %c0_38] : memref<8x8x32xf32, #tpu.memory_space<vmem>>, vector<1x8x32xf32>
    %114 = vector.shape_cast %113 : vector<1x8x32xf32> to vector<8x32xf32>
    %115 = vector.shape_cast %111 : vector<8x32xf32> to vector<1x8x32xf32>
    tpu.vector_store %arg8[%112, %c0_37, %c0_38], %115 {strides = array<i32>} : memref<8x8x32xf32, #tpu.memory_space<vmem>>, vector<1x8x32xf32>,
    %c3_i32 = arith.constant 3 : i32
    %116 = arith.index_cast %c3_i32 : i32 to index
    %c0_39 = arith.constant 0 : index
    %c0_40 = arith.constant 0 : index
    %117 = vector.load %arg7[%116, %c0_39, %c0_40] : memref<8x8x128xf32, #tpu.memory_space<vmem>>, vector<1x8x128xf32>
    %118 = vector.shape_cast %117 : vector<1x8x128xf32> to vector<8x128xf32>
    %cst_41 = arith.constant dense<0.000000e+00> : vector<8x128xf32>
    %119 = tpu.matmul %111, %11, %cst_41 {dimension_numbers = #tpu.dot_dimension_numbers<[1], [0], [0], [1], [0, 0, 1, 1], [], []>} : vector<8x32xf32>, vector<32x128xf32>, vector<8x128xf32> -> vector<8x128xf32>
    %120 = arith.addf %118, %119 : vector<8x128xf32>
    %121 = vector.extract_strided_slice %120 {offsets = [0, 0], sizes = [8, 32], strides = [1, 1]} : vector<8x128xf32> to vector<8x32xf32>
    %122 = arith.negf %121 : vector<8x32xf32>
    %123 = math.exp %122 : vector<8x32xf32>
    %cst_42 = arith.constant 1.000000e+00 : f32
    %124 = vector.broadcast %cst_42 : f32 to vector<8x32xf32>
    %125 = arith.addf %124, %123 : vector<8x32xf32>
    %126 = arith.divf %124, %125 : vector<8x32xf32>
    %127 = vector.extract_strided_slice %120 {offsets = [0, 32], sizes = [8, 32], strides = [1, 1]} : vector<8x128xf32> to vector<8x32xf32>
    %128 = arith.negf %127 : vector<8x32xf32>
    %129 = math.exp %128 : vector<8x32xf32>
    %cst_43 = arith.constant 1.000000e+00 : f32
    %130 = vector.broadcast %cst_43 : f32 to vector<8x32xf32>
    %131 = arith.addf %130, %129 : vector<8x32xf32>
    %132 = arith.divf %130, %131 : vector<8x32xf32>
    %133 = vector.extract_strided_slice %120 {offsets = [0, 64], sizes = [8, 32], strides = [1, 1]} : vector<8x128xf32> to vector<8x32xf32>
    %134 = math.tanh %133 : vector<8x32xf32>
    %135 = vector.extract_strided_slice %120 {offsets = [0, 96], sizes = [8, 32], strides = [1, 1]} : vector<8x128xf32> to vector<8x32xf32>
    %136 = arith.negf %135 : vector<8x32xf32>
    %137 = math.exp %136 : vector<8x32xf32>
    %cst_44 = arith.constant 1.000000e+00 : f32
    %138 = vector.broadcast %cst_44 : f32 to vector<8x32xf32>
    %139 = arith.addf %138, %137 : vector<8x32xf32>
    %140 = arith.divf %138, %139 : vector<8x32xf32>
    %141 = arith.mulf %132, %109 : vector<8x32xf32>
    %142 = arith.mulf %126, %134 : vector<8x32xf32>
    %143 = arith.addf %141, %142 : vector<8x32xf32>
    %144 = math.tanh %143 : vector<8x32xf32>
    %145 = arith.mulf %140, %144 : vector<8x32xf32>
    %146 = arith.index_cast %c3_i32 : i32 to index
    %c0_45 = arith.constant 0 : index
    %c0_46 = arith.constant 0 : index
    %147 = vector.load %arg8[%146, %c0_45, %c0_46] : memref<8x8x32xf32, #tpu.memory_space<vmem>>, vector<1x8x32xf32>
    %148 = vector.shape_cast %147 : vector<1x8x32xf32> to vector<8x32xf32>
    %149 = vector.shape_cast %145 : vector<8x32xf32> to vector<1x8x32xf32>
    tpu.vector_store %arg8[%146, %c0_45, %c0_46], %149 {strides = array<i32>} : memref<8x8x32xf32, #tpu.memory_space<vmem>>, vector<1x8x32xf32>,
    %c4_i32 = arith.constant 4 : i32
    %150 = arith.index_cast %c4_i32 : i32 to index
    %c0_47 = arith.constant 0 : index
    %c0_48 = arith.constant 0 : index
    %151 = vector.load %arg7[%150, %c0_47, %c0_48] : memref<8x8x128xf32, #tpu.memory_space<vmem>>, vector<1x8x128xf32>
    %152 = vector.shape_cast %151 : vector<1x8x128xf32> to vector<8x128xf32>
    %cst_49 = arith.constant dense<0.000000e+00> : vector<8x128xf32>
    %153 = tpu.matmul %145, %11, %cst_49 {dimension_numbers = #tpu.dot_dimension_numbers<[1], [0], [0], [1], [0, 0, 1, 1], [], []>} : vector<8x32xf32>, vector<32x128xf32>, vector<8x128xf32> -> vector<8x128xf32>
    %154 = arith.addf %152, %153 : vector<8x128xf32>
    %155 = vector.extract_strided_slice %154 {offsets = [0, 0], sizes = [8, 32], strides = [1, 1]} : vector<8x128xf32> to vector<8x32xf32>
    %156 = arith.negf %155 : vector<8x32xf32>
    %157 = math.exp %156 : vector<8x32xf32>
    %cst_50 = arith.constant 1.000000e+00 : f32
    %158 = vector.broadcast %cst_50 : f32 to vector<8x32xf32>
    %159 = arith.addf %158, %157 : vector<8x32xf32>
    %160 = arith.divf %158, %159 : vector<8x32xf32>
    %161 = vector.extract_strided_slice %154 {offsets = [0, 32], sizes = [8, 32], strides = [1, 1]} : vector<8x128xf32> to vector<8x32xf32>
    %162 = arith.negf %161 : vector<8x32xf32>
    %163 = math.exp %162 : vector<8x32xf32>
    %cst_51 = arith.constant 1.000000e+00 : f32
    %164 = vector.broadcast %cst_51 : f32 to vector<8x32xf32>
    %165 = arith.addf %164, %163 : vector<8x32xf32>
    %166 = arith.divf %164, %165 : vector<8x32xf32>
    %167 = vector.extract_strided_slice %154 {offsets = [0, 64], sizes = [8, 32], strides = [1, 1]} : vector<8x128xf32> to vector<8x32xf32>
    %168 = math.tanh %167 : vector<8x32xf32>
    %169 = vector.extract_strided_slice %154 {offsets = [0, 96], sizes = [8, 32], strides = [1, 1]} : vector<8x128xf32> to vector<8x32xf32>
    %170 = arith.negf %169 : vector<8x32xf32>
    %171 = math.exp %170 : vector<8x32xf32>
    %cst_52 = arith.constant 1.000000e+00 : f32
    %172 = vector.broadcast %cst_52 : f32 to vector<8x32xf32>
    %173 = arith.addf %172, %171 : vector<8x32xf32>
    %174 = arith.divf %172, %173 : vector<8x32xf32>
    %175 = arith.mulf %166, %143 : vector<8x32xf32>
    %176 = arith.mulf %160, %168 : vector<8x32xf32>
    %177 = arith.addf %175, %176 : vector<8x32xf32>
    %178 = math.tanh %177 : vector<8x32xf32>
    %179 = arith.mulf %174, %178 : vector<8x32xf32>
    %180 = arith.index_cast %c4_i32 : i32 to index
    %c0_53 = arith.constant 0 : index
    %c0_54 = arith.constant 0 : index
    %181 = vector.load %arg8[%180, %c0_53, %c0_54] : memref<8x8x32xf32, #tpu.memory_space<vmem>>, vector<1x8x32xf32>
    %182 = vector.shape_cast %181 : vector<1x8x32xf32> to vector<8x32xf32>
    %183 = vector.shape_cast %179 : vector<8x32xf32> to vector<1x8x32xf32>
    tpu.vector_store %arg8[%180, %c0_53, %c0_54], %183 {strides = array<i32>} : memref<8x8x32xf32, #tpu.memory_space<vmem>>, vector<1x8x32xf32>,
    %c5_i32 = arith.constant 5 : i32
    %184 = arith.index_cast %c5_i32 : i32 to index
    %c0_55 = arith.constant 0 : index
    %c0_56 = arith.constant 0 : index
    %185 = vector.load %arg7[%184, %c0_55, %c0_56] : memref<8x8x128xf32, #tpu.memory_space<vmem>>, vector<1x8x128xf32>
    %186 = vector.shape_cast %185 : vector<1x8x128xf32> to vector<8x128xf32>
    %cst_57 = arith.constant dense<0.000000e+00> : vector<8x128xf32>
    %187 = tpu.matmul %179, %11, %cst_57 {dimension_numbers = #tpu.dot_dimension_numbers<[1], [0], [0], [1], [0, 0, 1, 1], [], []>} : vector<8x32xf32>, vector<32x128xf32>, vector<8x128xf32> -> vector<8x128xf32>
    %188 = arith.addf %186, %187 : vector<8x128xf32>
    %189 = vector.extract_strided_slice %188 {offsets = [0, 0], sizes = [8, 32], strides = [1, 1]} : vector<8x128xf32> to vector<8x32xf32>
    %190 = arith.negf %189 : vector<8x32xf32>
    %191 = math.exp %190 : vector<8x32xf32>
    %cst_58 = arith.constant 1.000000e+00 : f32
    %192 = vector.broadcast %cst_58 : f32 to vector<8x32xf32>
    %193 = arith.addf %192, %191 : vector<8x32xf32>
    %194 = arith.divf %192, %193 : vector<8x32xf32>
    %195 = vector.extract_strided_slice %188 {offsets = [0, 32], sizes = [8, 32], strides = [1, 1]} : vector<8x128xf32> to vector<8x32xf32>
    %196 = arith.negf %195 : vector<8x32xf32>
    %197 = math.exp %196 : vector<8x32xf32>
    %cst_59 = arith.constant 1.000000e+00 : f32
    %198 = vector.broadcast %cst_59 : f32 to vector<8x32xf32>
    %199 = arith.addf %198, %197 : vector<8x32xf32>
    %200 = arith.divf %198, %199 : vector<8x32xf32>
    %201 = vector.extract_strided_slice %188 {offsets = [0, 64], sizes = [8, 32], strides = [1, 1]} : vector<8x128xf32> to vector<8x32xf32>
    %202 = math.tanh %201 : vector<8x32xf32>
    %203 = vector.extract_strided_slice %188 {offsets = [0, 96], sizes = [8, 32], strides = [1, 1]} : vector<8x128xf32> to vector<8x32xf32>
    %204 = arith.negf %203 : vector<8x32xf32>
    %205 = math.exp %204 : vector<8x32xf32>
    %cst_60 = arith.constant 1.000000e+00 : f32
    %206 = vector.broadcast %cst_60 : f32 to vector<8x32xf32>
    %207 = arith.addf %206, %205 : vector<8x32xf32>
    %208 = arith.divf %206, %207 : vector<8x32xf32>
    %209 = arith.mulf %200, %177 : vector<8x32xf32>
    %210 = arith.mulf %194, %202 : vector<8x32xf32>
    %211 = arith.addf %209, %210 : vector<8x32xf32>
    %212 = math.tanh %211 : vector<8x32xf32>
    %213 = arith.mulf %208, %212 : vector<8x32xf32>
    %214 = arith.index_cast %c5_i32 : i32 to index
    %c0_61 = arith.constant 0 : index
    %c0_62 = arith.constant 0 : index
    %215 = vector.load %arg8[%214, %c0_61, %c0_62] : memref<8x8x32xf32, #tpu.memory_space<vmem>>, vector<1x8x32xf32>
    %216 = vector.shape_cast %215 : vector<1x8x32xf32> to vector<8x32xf32>
    %217 = vector.shape_cast %213 : vector<8x32xf32> to vector<1x8x32xf32>
    tpu.vector_store %arg8[%214, %c0_61, %c0_62], %217 {strides = array<i32>} : memref<8x8x32xf32, #tpu.memory_space<vmem>>, vector<1x8x32xf32>,
    %c6_i32 = arith.constant 6 : i32
    %218 = arith.index_cast %c6_i32 : i32 to index
    %c0_63 = arith.constant 0 : index
    %c0_64 = arith.constant 0 : index
    %219 = vector.load %arg7[%218, %c0_63, %c0_64] : memref<8x8x128xf32, #tpu.memory_space<vmem>>, vector<1x8x128xf32>
    %220 = vector.shape_cast %219 : vector<1x8x128xf32> to vector<8x128xf32>
    %cst_65 = arith.constant dense<0.000000e+00> : vector<8x128xf32>
    %221 = tpu.matmul %213, %11, %cst_65 {dimension_numbers = #tpu.dot_dimension_numbers<[1], [0], [0], [1], [0, 0, 1, 1], [], []>} : vector<8x32xf32>, vector<32x128xf32>, vector<8x128xf32> -> vector<8x128xf32>
    %222 = arith.addf %220, %221 : vector<8x128xf32>
    %223 = vector.extract_strided_slice %222 {offsets = [0, 0], sizes = [8, 32], strides = [1, 1]} : vector<8x128xf32> to vector<8x32xf32>
    %224 = arith.negf %223 : vector<8x32xf32>
    %225 = math.exp %224 : vector<8x32xf32>
    %cst_66 = arith.constant 1.000000e+00 : f32
    %226 = vector.broadcast %cst_66 : f32 to vector<8x32xf32>
    %227 = arith.addf %226, %225 : vector<8x32xf32>
    %228 = arith.divf %226, %227 : vector<8x32xf32>
    %229 = vector.extract_strided_slice %222 {offsets = [0, 32], sizes = [8, 32], strides = [1, 1]} : vector<8x128xf32> to vector<8x32xf32>
    %230 = arith.negf %229 : vector<8x32xf32>
    %231 = math.exp %230 : vector<8x32xf32>
    %cst_67 = arith.constant 1.000000e+00 : f32
    %232 = vector.broadcast %cst_67 : f32 to vector<8x32xf32>
    %233 = arith.addf %232, %231 : vector<8x32xf32>
    %234 = arith.divf %232, %233 : vector<8x32xf32>
    %235 = vector.extract_strided_slice %222 {offsets = [0, 64], sizes = [8, 32], strides = [1, 1]} : vector<8x128xf32> to vector<8x32xf32>
    %236 = math.tanh %235 : vector<8x32xf32>
    %237 = vector.extract_strided_slice %222 {offsets = [0, 96], sizes = [8, 32], strides = [1, 1]} : vector<8x128xf32> to vector<8x32xf32>
    %238 = arith.negf %237 : vector<8x32xf32>
    %239 = math.exp %238 : vector<8x32xf32>
    %cst_68 = arith.constant 1.000000e+00 : f32
    %240 = vector.broadcast %cst_68 : f32 to vector<8x32xf32>
    %241 = arith.addf %240, %239 : vector<8x32xf32>
    %242 = arith.divf %240, %241 : vector<8x32xf32>
    %243 = arith.mulf %234, %211 : vector<8x32xf32>
    %244 = arith.mulf %228, %236 : vector<8x32xf32>
    %245 = arith.addf %243, %244 : vector<8x32xf32>
    %246 = math.tanh %245 : vector<8x32xf32>
    %247 = arith.mulf %242, %246 : vector<8x32xf32>
    %248 = arith.index_cast %c6_i32 : i32 to index
    %c0_69 = arith.constant 0 : index
    %c0_70 = arith.constant 0 : index
    %249 = vector.load %arg8[%248, %c0_69, %c0_70] : memref<8x8x32xf32, #tpu.memory_space<vmem>>, vector<1x8x32xf32>
    %250 = vector.shape_cast %249 : vector<1x8x32xf32> to vector<8x32xf32>
    %251 = vector.shape_cast %247 : vector<8x32xf32> to vector<1x8x32xf32>
    tpu.vector_store %arg8[%248, %c0_69, %c0_70], %251 {strides = array<i32>} : memref<8x8x32xf32, #tpu.memory_space<vmem>>, vector<1x8x32xf32>,
    %c7_i32 = arith.constant 7 : i32
    %252 = arith.index_cast %c7_i32 : i32 to index
    %c0_71 = arith.constant 0 : index
    %c0_72 = arith.constant 0 : index
    %253 = vector.load %arg7[%252, %c0_71, %c0_72] : memref<8x8x128xf32, #tpu.memory_space<vmem>>, vector<1x8x128xf32>
    %254 = vector.shape_cast %253 : vector<1x8x128xf32> to vector<8x128xf32>
    %cst_73 = arith.constant dense<0.000000e+00> : vector<8x128xf32>
    %255 = tpu.matmul %247, %11, %cst_73 {dimension_numbers = #tpu.dot_dimension_numbers<[1], [0], [0], [1], [0, 0, 1, 1], [], []>} : vector<8x32xf32>, vector<32x128xf32>, vector<8x128xf32> -> vector<8x128xf32>
    %256 = arith.addf %254, %255 : vector<8x128xf32>
    %257 = vector.extract_strided_slice %256 {offsets = [0, 0], sizes = [8, 32], strides = [1, 1]} : vector<8x128xf32> to vector<8x32xf32>
    %258 = arith.negf %257 : vector<8x32xf32>
    %259 = math.exp %258 : vector<8x32xf32>
    %cst_74 = arith.constant 1.000000e+00 : f32
    %260 = vector.broadcast %cst_74 : f32 to vector<8x32xf32>
    %261 = arith.addf %260, %259 : vector<8x32xf32>
    %262 = arith.divf %260, %261 : vector<8x32xf32>
    %263 = vector.extract_strided_slice %256 {offsets = [0, 32], sizes = [8, 32], strides = [1, 1]} : vector<8x128xf32> to vector<8x32xf32>
    %264 = arith.negf %263 : vector<8x32xf32>
    %265 = math.exp %264 : vector<8x32xf32>
    %cst_75 = arith.constant 1.000000e+00 : f32
    %266 = vector.broadcast %cst_75 : f32 to vector<8x32xf32>
    %267 = arith.addf %266, %265 : vector<8x32xf32>
    %268 = arith.divf %266, %267 : vector<8x32xf32>
    %269 = vector.extract_strided_slice %256 {offsets = [0, 64], sizes = [8, 32], strides = [1, 1]} : vector<8x128xf32> to vector<8x32xf32>
    %270 = math.tanh %269 : vector<8x32xf32>
    %271 = vector.extract_strided_slice %256 {offsets = [0, 96], sizes = [8, 32], strides = [1, 1]} : vector<8x128xf32> to vector<8x32xf32>
    %272 = arith.negf %271 : vector<8x32xf32>
    %273 = math.exp %272 : vector<8x32xf32>
    %cst_76 = arith.constant 1.000000e+00 : f32
    %274 = vector.broadcast %cst_76 : f32 to vector<8x32xf32>
    %275 = arith.addf %274, %273 : vector<8x32xf32>
    %276 = arith.divf %274, %275 : vector<8x32xf32>
    %277 = arith.mulf %268, %245 : vector<8x32xf32>
    %278 = arith.mulf %262, %270 : vector<8x32xf32>
    %279 = arith.addf %277, %278 : vector<8x32xf32>
    %280 = math.tanh %279 : vector<8x32xf32>
    %281 = arith.mulf %276, %280 : vector<8x32xf32>
    %282 = arith.index_cast %c7_i32 : i32 to index
    %c0_77 = arith.constant 0 : index
    %c0_78 = arith.constant 0 : index
    %283 = vector.load %arg8[%282, %c0_77, %c0_78] : memref<8x8x32xf32, #tpu.memory_space<vmem>>, vector<1x8x32xf32>
    %284 = vector.shape_cast %283 : vector<1x8x32xf32> to vector<8x32xf32>
    %285 = vector.shape_cast %281 : vector<8x32xf32> to vector<1x8x32xf32>
    tpu.vector_store %arg8[%282, %c0_77, %c0_78], %285 {strides = array<i32>} : memref<8x8x32xf32, #tpu.memory_space<vmem>>, vector<1x8x32xf32>,
    %c8_i32 = arith.constant 8 : i32
    %c0_79 = arith.constant 0 : index
    %c0_80 = arith.constant 0 : index
    %c0_81 = arith.constant 0 : index
    %286 = vector.load %arg8[%c0_79, %c0_80, %c0_81] : memref<8x8x32xf32, #tpu.memory_space<vmem>>, vector<8x8x32xf32>
    %287 = vector.shape_cast %286 : vector<8x8x32xf32> to vector<64x32xf32>
    %c0_82 = arith.constant 0 : index
    %c0_83 = arith.constant 0 : index
    %c0_84 = arith.constant 0 : index
    %288 = vector.load %arg3[%c0_82, %c0_83, %c0_84] : memref<1x32x128xf32, #tpu.memory_space<vmem>>, vector<1x32x128xf32>
    %289 = vector.shape_cast %288 : vector<1x32x128xf32> to vector<32x128xf32>
    %cst_85 = arith.constant dense<0.000000e+00> : vector<64x128xf32>
    %290 = tpu.matmul %287, %289, %cst_85 {dimension_numbers = #tpu.dot_dimension_numbers<[1], [0], [0], [1], [0, 0, 1, 1], [], []>} : vector<64x32xf32>, vector<32x128xf32>, vector<64x128xf32> -> vector<64x128xf32>
    %c1 = arith.constant 1 : index
    %c0_86 = arith.constant 0 : index
    %c0_87 = arith.constant 0 : index
    %291 = vector.load %arg5[%c1, %c0_86, %c0_87] : memref<2x1x128xf32, #tpu.memory_space<vmem>>, vector<1x1x128xf32>
    %292 = vector.shape_cast %291 : vector<1x1x128xf32> to vector<1x128xf32>
    %293 = vector.broadcast %292 : vector<1x128xf32> to vector<64x128xf32>
    %294 = arith.addf %290, %293 : vector<64x128xf32>
    %295 = vector.shape_cast %294 : vector<64x128xf32> to vector<8x8x128xf32>
    %c0_88 = arith.constant 0 : index
    %c0_89 = arith.constant 0 : index
    %c0_90 = arith.constant 0 : index
    %296 = vector.load %arg7[%c0_88, %c0_89, %c0_90] : memref<8x8x128xf32, #tpu.memory_space<vmem>>, vector<8x8x128xf32>
    tpu.vector_store %arg7[%c0_88, %c0_89, %c0_90], %295 {strides = array<i32>} : memref<8x8x128xf32, #tpu.memory_space<vmem>>, vector<8x8x128xf32>,
    %c1_91 = arith.constant 1 : index
    %c0_92 = arith.constant 0 : index
    %c0_93 = arith.constant 0 : index
    %297 = vector.load %arg4[%c1_91, %c0_92, %c0_93] : memref<2x32x128xf32, #tpu.memory_space<vmem>>, vector<1x32x128xf32>
    %298 = vector.shape_cast %297 : vector<1x32x128xf32> to vector<32x128xf32>
    %cst_94 = arith.constant 0.000000e+00 : f32
    %299 = vector.broadcast %cst_94 : f32 to vector<8x32xf32>
    %cst_95 = arith.constant 0.000000e+00 : f32
    %300 = vector.broadcast %cst_95 : f32 to vector<8x32xf32>
    %c0_i32_96 = arith.constant 0 : i32
    %301 = arith.index_cast %c0_i32_96 : i32 to index
    %c0_97 = arith.constant 0 : index
    %c0_98 = arith.constant 0 : index
    %302 = vector.load %arg7[%301, %c0_97, %c0_98] : memref<8x8x128xf32, #tpu.memory_space<vmem>>, vector<1x8x128xf32>
    %303 = vector.shape_cast %302 : vector<1x8x128xf32> to vector<8x128xf32>
    %cst_99 = arith.constant dense<0.000000e+00> : vector<8x128xf32>
    %304 = tpu.matmul %299, %298, %cst_99 {dimension_numbers = #tpu.dot_dimension_numbers<[1], [0], [0], [1], [0, 0, 1, 1], [], []>} : vector<8x32xf32>, vector<32x128xf32>, vector<8x128xf32> -> vector<8x128xf32>
    %305 = arith.addf %303, %304 : vector<8x128xf32>
    %306 = vector.extract_strided_slice %305 {offsets = [0, 0], sizes = [8, 32], strides = [1, 1]} : vector<8x128xf32> to vector<8x32xf32>
    %307 = arith.negf %306 : vector<8x32xf32>
    %308 = math.exp %307 : vector<8x32xf32>
    %cst_100 = arith.constant 1.000000e+00 : f32
    %309 = vector.broadcast %cst_100 : f32 to vector<8x32xf32>
    %310 = arith.addf %309, %308 : vector<8x32xf32>
    %311 = arith.divf %309, %310 : vector<8x32xf32>
    %312 = vector.extract_strided_slice %305 {offsets = [0, 32], sizes = [8, 32], strides = [1, 1]} : vector<8x128xf32> to vector<8x32xf32>
    %313 = arith.negf %312 : vector<8x32xf32>
    %314 = math.exp %313 : vector<8x32xf32>
    %cst_101 = arith.constant 1.000000e+00 : f32
    %315 = vector.broadcast %cst_101 : f32 to vector<8x32xf32>
    %316 = arith.addf %315, %314 : vector<8x32xf32>
    %317 = arith.divf %315, %316 : vector<8x32xf32>
    %318 = vector.extract_strided_slice %305 {offsets = [0, 64], sizes = [8, 32], strides = [1, 1]} : vector<8x128xf32> to vector<8x32xf32>
    %319 = math.tanh %318 : vector<8x32xf32>
    %320 = vector.extract_strided_slice %305 {offsets = [0, 96], sizes = [8, 32], strides = [1, 1]} : vector<8x128xf32> to vector<8x32xf32>
    %321 = arith.negf %320 : vector<8x32xf32>
    %322 = math.exp %321 : vector<8x32xf32>
    %cst_102 = arith.constant 1.000000e+00 : f32
    %323 = vector.broadcast %cst_102 : f32 to vector<8x32xf32>
    %324 = arith.addf %323, %322 : vector<8x32xf32>
    %325 = arith.divf %323, %324 : vector<8x32xf32>
    %326 = arith.mulf %317, %300 : vector<8x32xf32>
    %327 = arith.mulf %311, %319 : vector<8x32xf32>
    %328 = arith.addf %326, %327 : vector<8x32xf32>
    %329 = math.tanh %328 : vector<8x32xf32>
    %330 = arith.mulf %325, %329 : vector<8x32xf32>
    %331 = arith.index_cast %c0_i32_96 : i32 to index
    %c0_103 = arith.constant 0 : index
    %c0_104 = arith.constant 0 : index
    %332 = vector.load %arg8[%331, %c0_103, %c0_104] : memref<8x8x32xf32, #tpu.memory_space<vmem>>, vector<1x8x32xf32>
    %333 = vector.shape_cast %332 : vector<1x8x32xf32> to vector<8x32xf32>
    %334 = vector.shape_cast %330 : vector<8x32xf32> to vector<1x8x32xf32>
    tpu.vector_store %arg8[%331, %c0_103, %c0_104], %334 {strides = array<i32>} : memref<8x8x32xf32, #tpu.memory_space<vmem>>, vector<1x8x32xf32>,
    %c1_i32_105 = arith.constant 1 : i32
    %335 = arith.index_cast %c1_i32_105 : i32 to index
    %c0_106 = arith.constant 0 : index
    %c0_107 = arith.constant 0 : index
    %336 = vector.load %arg7[%335, %c0_106, %c0_107] : memref<8x8x128xf32, #tpu.memory_space<vmem>>, vector<1x8x128xf32>
    %337 = vector.shape_cast %336 : vector<1x8x128xf32> to vector<8x128xf32>
    %cst_108 = arith.constant dense<0.000000e+00> : vector<8x128xf32>
    %338 = tpu.matmul %330, %298, %cst_108 {dimension_numbers = #tpu.dot_dimension_numbers<[1], [0], [0], [1], [0, 0, 1, 1], [], []>} : vector<8x32xf32>, vector<32x128xf32>, vector<8x128xf32> -> vector<8x128xf32>
    %339 = arith.addf %337, %338 : vector<8x128xf32>
    %340 = vector.extract_strided_slice %339 {offsets = [0, 0], sizes = [8, 32], strides = [1, 1]} : vector<8x128xf32> to vector<8x32xf32>
    %341 = arith.negf %340 : vector<8x32xf32>
    %342 = math.exp %341 : vector<8x32xf32>
    %cst_109 = arith.constant 1.000000e+00 : f32
    %343 = vector.broadcast %cst_109 : f32 to vector<8x32xf32>
    %344 = arith.addf %343, %342 : vector<8x32xf32>
    %345 = arith.divf %343, %344 : vector<8x32xf32>
    %346 = vector.extract_strided_slice %339 {offsets = [0, 32], sizes = [8, 32], strides = [1, 1]} : vector<8x128xf32> to vector<8x32xf32>
    %347 = arith.negf %346 : vector<8x32xf32>
    %348 = math.exp %347 : vector<8x32xf32>
    %cst_110 = arith.constant 1.000000e+00 : f32
    %349 = vector.broadcast %cst_110 : f32 to vector<8x32xf32>
    %350 = arith.addf %349, %348 : vector<8x32xf32>
    %351 = arith.divf %349, %350 : vector<8x32xf32>
    %352 = vector.extract_strided_slice %339 {offsets = [0, 64], sizes = [8, 32], strides = [1, 1]} : vector<8x128xf32> to vector<8x32xf32>
    %353 = math.tanh %352 : vector<8x32xf32>
    %354 = vector.extract_strided_slice %339 {offsets = [0, 96], sizes = [8, 32], strides = [1, 1]} : vector<8x128xf32> to vector<8x32xf32>
    %355 = arith.negf %354 : vector<8x32xf32>
    %356 = math.exp %355 : vector<8x32xf32>
    %cst_111 = arith.constant 1.000000e+00 : f32
    %357 = vector.broadcast %cst_111 : f32 to vector<8x32xf32>
    %358 = arith.addf %357, %356 : vector<8x32xf32>
    %359 = arith.divf %357, %358 : vector<8x32xf32>
    %360 = arith.mulf %351, %328 : vector<8x32xf32>
    %361 = arith.mulf %345, %353 : vector<8x32xf32>
    %362 = arith.addf %360, %361 : vector<8x32xf32>
    %363 = math.tanh %362 : vector<8x32xf32>
    %364 = arith.mulf %359, %363 : vector<8x32xf32>
    %365 = arith.index_cast %c1_i32_105 : i32 to index
    %c0_112 = arith.constant 0 : index
    %c0_113 = arith.constant 0 : index
    %366 = vector.load %arg8[%365, %c0_112, %c0_113] : memref<8x8x32xf32, #tpu.memory_space<vmem>>, vector<1x8x32xf32>
    %367 = vector.shape_cast %366 : vector<1x8x32xf32> to vector<8x32xf32>
    %368 = vector.shape_cast %364 : vector<8x32xf32> to vector<1x8x32xf32>
    tpu.vector_store %arg8[%365, %c0_112, %c0_113], %368 {strides = array<i32>} : memref<8x8x32xf32, #tpu.memory_space<vmem>>, vector<1x8x32xf32>,
    %c2_i32_114 = arith.constant 2 : i32
    %369 = arith.index_cast %c2_i32_114 : i32 to index
    %c0_115 = arith.constant 0 : index
    %c0_116 = arith.constant 0 : index
    %370 = vector.load %arg7[%369, %c0_115, %c0_116] : memref<8x8x128xf32, #tpu.memory_space<vmem>>, vector<1x8x128xf32>
    %371 = vector.shape_cast %370 : vector<1x8x128xf32> to vector<8x128xf32>
    %cst_117 = arith.constant dense<0.000000e+00> : vector<8x128xf32>
    %372 = tpu.matmul %364, %298, %cst_117 {dimension_numbers = #tpu.dot_dimension_numbers<[1], [0], [0], [1], [0, 0, 1, 1], [], []>} : vector<8x32xf32>, vector<32x128xf32>, vector<8x128xf32> -> vector<8x128xf32>
    %373 = arith.addf %371, %372 : vector<8x128xf32>
    %374 = vector.extract_strided_slice %373 {offsets = [0, 0], sizes = [8, 32], strides = [1, 1]} : vector<8x128xf32> to vector<8x32xf32>
    %375 = arith.negf %374 : vector<8x32xf32>
    %376 = math.exp %375 : vector<8x32xf32>
    %cst_118 = arith.constant 1.000000e+00 : f32
    %377 = vector.broadcast %cst_118 : f32 to vector<8x32xf32>
    %378 = arith.addf %377, %376 : vector<8x32xf32>
    %379 = arith.divf %377, %378 : vector<8x32xf32>
    %380 = vector.extract_strided_slice %373 {offsets = [0, 32], sizes = [8, 32], strides = [1, 1]} : vector<8x128xf32> to vector<8x32xf32>
    %381 = arith.negf %380 : vector<8x32xf32>
    %382 = math.exp %381 : vector<8x32xf32>
    %cst_119 = arith.constant 1.000000e+00 : f32
    %383 = vector.broadcast %cst_119 : f32 to vector<8x32xf32>
    %384 = arith.addf %383, %382 : vector<8x32xf32>
    %385 = arith.divf %383, %384 : vector<8x32xf32>
    %386 = vector.extract_strided_slice %373 {offsets = [0, 64], sizes = [8, 32], strides = [1, 1]} : vector<8x128xf32> to vector<8x32xf32>
    %387 = math.tanh %386 : vector<8x32xf32>
    %388 = vector.extract_strided_slice %373 {offsets = [0, 96], sizes = [8, 32], strides = [1, 1]} : vector<8x128xf32> to vector<8x32xf32>
    %389 = arith.negf %388 : vector<8x32xf32>
    %390 = math.exp %389 : vector<8x32xf32>
    %cst_120 = arith.constant 1.000000e+00 : f32
    %391 = vector.broadcast %cst_120 : f32 to vector<8x32xf32>
    %392 = arith.addf %391, %390 : vector<8x32xf32>
    %393 = arith.divf %391, %392 : vector<8x32xf32>
    %394 = arith.mulf %385, %362 : vector<8x32xf32>
    %395 = arith.mulf %379, %387 : vector<8x32xf32>
    %396 = arith.addf %394, %395 : vector<8x32xf32>
    %397 = math.tanh %396 : vector<8x32xf32>
    %398 = arith.mulf %393, %397 : vector<8x32xf32>
    %399 = arith.index_cast %c2_i32_114 : i32 to index
    %c0_121 = arith.constant 0 : index
    %c0_122 = arith.constant 0 : index
    %400 = vector.load %arg8[%399, %c0_121, %c0_122] : memref<8x8x32xf32, #tpu.memory_space<vmem>>, vector<1x8x32xf32>
    %401 = vector.shape_cast %400 : vector<1x8x32xf32> to vector<8x32xf32>
    %402 = vector.shape_cast %398 : vector<8x32xf32> to vector<1x8x32xf32>
    tpu.vector_store %arg8[%399, %c0_121, %c0_122], %402 {strides = array<i32>} : memref<8x8x32xf32, #tpu.memory_space<vmem>>, vector<1x8x32xf32>,
    %c3_i32_123 = arith.constant 3 : i32
    %403 = arith.index_cast %c3_i32_123 : i32 to index
    %c0_124 = arith.constant 0 : index
    %c0_125 = arith.constant 0 : index
    %404 = vector.load %arg7[%403, %c0_124, %c0_125] : memref<8x8x128xf32, #tpu.memory_space<vmem>>, vector<1x8x128xf32>
    %405 = vector.shape_cast %404 : vector<1x8x128xf32> to vector<8x128xf32>
    %cst_126 = arith.constant dense<0.000000e+00> : vector<8x128xf32>
    %406 = tpu.matmul %398, %298, %cst_126 {dimension_numbers = #tpu.dot_dimension_numbers<[1], [0], [0], [1], [0, 0, 1, 1], [], []>} : vector<8x32xf32>, vector<32x128xf32>, vector<8x128xf32> -> vector<8x128xf32>
    %407 = arith.addf %405, %406 : vector<8x128xf32>
    %408 = vector.extract_strided_slice %407 {offsets = [0, 0], sizes = [8, 32], strides = [1, 1]} : vector<8x128xf32> to vector<8x32xf32>
    %409 = arith.negf %408 : vector<8x32xf32>
    %410 = math.exp %409 : vector<8x32xf32>
    %cst_127 = arith.constant 1.000000e+00 : f32
    %411 = vector.broadcast %cst_127 : f32 to vector<8x32xf32>
    %412 = arith.addf %411, %410 : vector<8x32xf32>
    %413 = arith.divf %411, %412 : vector<8x32xf32>
    %414 = vector.extract_strided_slice %407 {offsets = [0, 32], sizes = [8, 32], strides = [1, 1]} : vector<8x128xf32> to vector<8x32xf32>
    %415 = arith.negf %414 : vector<8x32xf32>
    %416 = math.exp %415 : vector<8x32xf32>
    %cst_128 = arith.constant 1.000000e+00 : f32
    %417 = vector.broadcast %cst_128 : f32 to vector<8x32xf32>
    %418 = arith.addf %417, %416 : vector<8x32xf32>
    %419 = arith.divf %417, %418 : vector<8x32xf32>
    %420 = vector.extract_strided_slice %407 {offsets = [0, 64], sizes = [8, 32], strides = [1, 1]} : vector<8x128xf32> to vector<8x32xf32>
    %421 = math.tanh %420 : vector<8x32xf32>
    %422 = vector.extract_strided_slice %407 {offsets = [0, 96], sizes = [8, 32], strides = [1, 1]} : vector<8x128xf32> to vector<8x32xf32>
    %423 = arith.negf %422 : vector<8x32xf32>
    %424 = math.exp %423 : vector<8x32xf32>
    %cst_129 = arith.constant 1.000000e+00 : f32
    %425 = vector.broadcast %cst_129 : f32 to vector<8x32xf32>
    %426 = arith.addf %425, %424 : vector<8x32xf32>
    %427 = arith.divf %425, %426 : vector<8x32xf32>
    %428 = arith.mulf %419, %396 : vector<8x32xf32>
    %429 = arith.mulf %413, %421 : vector<8x32xf32>
    %430 = arith.addf %428, %429 : vector<8x32xf32>
    %431 = math.tanh %430 : vector<8x32xf32>
    %432 = arith.mulf %427, %431 : vector<8x32xf32>
    %433 = arith.index_cast %c3_i32_123 : i32 to index
    %c0_130 = arith.constant 0 : index
    %c0_131 = arith.constant 0 : index
    %434 = vector.load %arg8[%433, %c0_130, %c0_131] : memref<8x8x32xf32, #tpu.memory_space<vmem>>, vector<1x8x32xf32>
    %435 = vector.shape_cast %434 : vector<1x8x32xf32> to vector<8x32xf32>
    %436 = vector.shape_cast %432 : vector<8x32xf32> to vector<1x8x32xf32>
    tpu.vector_store %arg8[%433, %c0_130, %c0_131], %436 {strides = array<i32>} : memref<8x8x32xf32, #tpu.memory_space<vmem>>, vector<1x8x32xf32>,
    %c4_i32_132 = arith.constant 4 : i32
    %437 = arith.index_cast %c4_i32_132 : i32 to index
    %c0_133 = arith.constant 0 : index
    %c0_134 = arith.constant 0 : index
    %438 = vector.load %arg7[%437, %c0_133, %c0_134] : memref<8x8x128xf32, #tpu.memory_space<vmem>>, vector<1x8x128xf32>
    %439 = vector.shape_cast %438 : vector<1x8x128xf32> to vector<8x128xf32>
    %cst_135 = arith.constant dense<0.000000e+00> : vector<8x128xf32>
    %440 = tpu.matmul %432, %298, %cst_135 {dimension_numbers = #tpu.dot_dimension_numbers<[1], [0], [0], [1], [0, 0, 1, 1], [], []>} : vector<8x32xf32>, vector<32x128xf32>, vector<8x128xf32> -> vector<8x128xf32>
    %441 = arith.addf %439, %440 : vector<8x128xf32>
    %442 = vector.extract_strided_slice %441 {offsets = [0, 0], sizes = [8, 32], strides = [1, 1]} : vector<8x128xf32> to vector<8x32xf32>
    %443 = arith.negf %442 : vector<8x32xf32>
    %444 = math.exp %443 : vector<8x32xf32>
    %cst_136 = arith.constant 1.000000e+00 : f32
    %445 = vector.broadcast %cst_136 : f32 to vector<8x32xf32>
    %446 = arith.addf %445, %444 : vector<8x32xf32>
    %447 = arith.divf %445, %446 : vector<8x32xf32>
    %448 = vector.extract_strided_slice %441 {offsets = [0, 32], sizes = [8, 32], strides = [1, 1]} : vector<8x128xf32> to vector<8x32xf32>
    %449 = arith.negf %448 : vector<8x32xf32>
    %450 = math.exp %449 : vector<8x32xf32>
    %cst_137 = arith.constant 1.000000e+00 : f32
    %451 = vector.broadcast %cst_137 : f32 to vector<8x32xf32>
    %452 = arith.addf %451, %450 : vector<8x32xf32>
    %453 = arith.divf %451, %452 : vector<8x32xf32>
    %454 = vector.extract_strided_slice %441 {offsets = [0, 64], sizes = [8, 32], strides = [1, 1]} : vector<8x128xf32> to vector<8x32xf32>
    %455 = math.tanh %454 : vector<8x32xf32>
    %456 = vector.extract_strided_slice %441 {offsets = [0, 96], sizes = [8, 32], strides = [1, 1]} : vector<8x128xf32> to vector<8x32xf32>
    %457 = arith.negf %456 : vector<8x32xf32>
    %458 = math.exp %457 : vector<8x32xf32>
    %cst_138 = arith.constant 1.000000e+00 : f32
    %459 = vector.broadcast %cst_138 : f32 to vector<8x32xf32>
    %460 = arith.addf %459, %458 : vector<8x32xf32>
    %461 = arith.divf %459, %460 : vector<8x32xf32>
    %462 = arith.mulf %453, %430 : vector<8x32xf32>
    %463 = arith.mulf %447, %455 : vector<8x32xf32>
    %464 = arith.addf %462, %463 : vector<8x32xf32>
    %465 = math.tanh %464 : vector<8x32xf32>
    %466 = arith.mulf %461, %465 : vector<8x32xf32>
    %467 = arith.index_cast %c4_i32_132 : i32 to index
    %c0_139 = arith.constant 0 : index
    %c0_140 = arith.constant 0 : index
    %468 = vector.load %arg8[%467, %c0_139, %c0_140] : memref<8x8x32xf32, #tpu.memory_space<vmem>>, vector<1x8x32xf32>
    %469 = vector.shape_cast %468 : vector<1x8x32xf32> to vector<8x32xf32>
    %470 = vector.shape_cast %466 : vector<8x32xf32> to vector<1x8x32xf32>
    tpu.vector_store %arg8[%467, %c0_139, %c0_140], %470 {strides = array<i32>} : memref<8x8x32xf32, #tpu.memory_space<vmem>>, vector<1x8x32xf32>,
    %c5_i32_141 = arith.constant 5 : i32
    %471 = arith.index_cast %c5_i32_141 : i32 to index
    %c0_142 = arith.constant 0 : index
    %c0_143 = arith.constant 0 : index
    %472 = vector.load %arg7[%471, %c0_142, %c0_143] : memref<8x8x128xf32, #tpu.memory_space<vmem>>, vector<1x8x128xf32>
    %473 = vector.shape_cast %472 : vector<1x8x128xf32> to vector<8x128xf32>
    %cst_144 = arith.constant dense<0.000000e+00> : vector<8x128xf32>
    %474 = tpu.matmul %466, %298, %cst_144 {dimension_numbers = #tpu.dot_dimension_numbers<[1], [0], [0], [1], [0, 0, 1, 1], [], []>} : vector<8x32xf32>, vector<32x128xf32>, vector<8x128xf32> -> vector<8x128xf32>
    %475 = arith.addf %473, %474 : vector<8x128xf32>
    %476 = vector.extract_strided_slice %475 {offsets = [0, 0], sizes = [8, 32], strides = [1, 1]} : vector<8x128xf32> to vector<8x32xf32>
    %477 = arith.negf %476 : vector<8x32xf32>
    %478 = math.exp %477 : vector<8x32xf32>
    %cst_145 = arith.constant 1.000000e+00 : f32
    %479 = vector.broadcast %cst_145 : f32 to vector<8x32xf32>
    %480 = arith.addf %479, %478 : vector<8x32xf32>
    %481 = arith.divf %479, %480 : vector<8x32xf32>
    %482 = vector.extract_strided_slice %475 {offsets = [0, 32], sizes = [8, 32], strides = [1, 1]} : vector<8x128xf32> to vector<8x32xf32>
    %483 = arith.negf %482 : vector<8x32xf32>
    %484 = math.exp %483 : vector<8x32xf32>
    %cst_146 = arith.constant 1.000000e+00 : f32
    %485 = vector.broadcast %cst_146 : f32 to vector<8x32xf32>
    %486 = arith.addf %485, %484 : vector<8x32xf32>
    %487 = arith.divf %485, %486 : vector<8x32xf32>
    %488 = vector.extract_strided_slice %475 {offsets = [0, 64], sizes = [8, 32], strides = [1, 1]} : vector<8x128xf32> to vector<8x32xf32>
    %489 = math.tanh %488 : vector<8x32xf32>
    %490 = vector.extract_strided_slice %475 {offsets = [0, 96], sizes = [8, 32], strides = [1, 1]} : vector<8x128xf32> to vector<8x32xf32>
    %491 = arith.negf %490 : vector<8x32xf32>
    %492 = math.exp %491 : vector<8x32xf32>
    %cst_147 = arith.constant 1.000000e+00 : f32
    %493 = vector.broadcast %cst_147 : f32 to vector<8x32xf32>
    %494 = arith.addf %493, %492 : vector<8x32xf32>
    %495 = arith.divf %493, %494 : vector<8x32xf32>
    %496 = arith.mulf %487, %464 : vector<8x32xf32>
    %497 = arith.mulf %481, %489 : vector<8x32xf32>
    %498 = arith.addf %496, %497 : vector<8x32xf32>
    %499 = math.tanh %498 : vector<8x32xf32>
    %500 = arith.mulf %495, %499 : vector<8x32xf32>
    %501 = arith.index_cast %c5_i32_141 : i32 to index
    %c0_148 = arith.constant 0 : index
    %c0_149 = arith.constant 0 : index
    %502 = vector.load %arg8[%501, %c0_148, %c0_149] : memref<8x8x32xf32, #tpu.memory_space<vmem>>, vector<1x8x32xf32>
    %503 = vector.shape_cast %502 : vector<1x8x32xf32> to vector<8x32xf32>
    %504 = vector.shape_cast %500 : vector<8x32xf32> to vector<1x8x32xf32>
    tpu.vector_store %arg8[%501, %c0_148, %c0_149], %504 {strides = array<i32>} : memref<8x8x32xf32, #tpu.memory_space<vmem>>, vector<1x8x32xf32>,
    %c6_i32_150 = arith.constant 6 : i32
    %505 = arith.index_cast %c6_i32_150 : i32 to index
    %c0_151 = arith.constant 0 : index
    %c0_152 = arith.constant 0 : index
    %506 = vector.load %arg7[%505, %c0_151, %c0_152] : memref<8x8x128xf32, #tpu.memory_space<vmem>>, vector<1x8x128xf32>
    %507 = vector.shape_cast %506 : vector<1x8x128xf32> to vector<8x128xf32>
    %cst_153 = arith.constant dense<0.000000e+00> : vector<8x128xf32>
    %508 = tpu.matmul %500, %298, %cst_153 {dimension_numbers = #tpu.dot_dimension_numbers<[1], [0], [0], [1], [0, 0, 1, 1], [], []>} : vector<8x32xf32>, vector<32x128xf32>, vector<8x128xf32> -> vector<8x128xf32>
    %509 = arith.addf %507, %508 : vector<8x128xf32>
    %510 = vector.extract_strided_slice %509 {offsets = [0, 0], sizes = [8, 32], strides = [1, 1]} : vector<8x128xf32> to vector<8x32xf32>
    %511 = arith.negf %510 : vector<8x32xf32>
    %512 = math.exp %511 : vector<8x32xf32>
    %cst_154 = arith.constant 1.000000e+00 : f32
    %513 = vector.broadcast %cst_154 : f32 to vector<8x32xf32>
    %514 = arith.addf %513, %512 : vector<8x32xf32>
    %515 = arith.divf %513, %514 : vector<8x32xf32>
    %516 = vector.extract_strided_slice %509 {offsets = [0, 32], sizes = [8, 32], strides = [1, 1]} : vector<8x128xf32> to vector<8x32xf32>
    %517 = arith.negf %516 : vector<8x32xf32>
    %518 = math.exp %517 : vector<8x32xf32>
    %cst_155 = arith.constant 1.000000e+00 : f32
    %519 = vector.broadcast %cst_155 : f32 to vector<8x32xf32>
    %520 = arith.addf %519, %518 : vector<8x32xf32>
    %521 = arith.divf %519, %520 : vector<8x32xf32>
    %522 = vector.extract_strided_slice %509 {offsets = [0, 64], sizes = [8, 32], strides = [1, 1]} : vector<8x128xf32> to vector<8x32xf32>
    %523 = math.tanh %522 : vector<8x32xf32>
    %524 = vector.extract_strided_slice %509 {offsets = [0, 96], sizes = [8, 32], strides = [1, 1]} : vector<8x128xf32> to vector<8x32xf32>
    %525 = arith.negf %524 : vector<8x32xf32>
    %526 = math.exp %525 : vector<8x32xf32>
    %cst_156 = arith.constant 1.000000e+00 : f32
    %527 = vector.broadcast %cst_156 : f32 to vector<8x32xf32>
    %528 = arith.addf %527, %526 : vector<8x32xf32>
    %529 = arith.divf %527, %528 : vector<8x32xf32>
    %530 = arith.mulf %521, %498 : vector<8x32xf32>
    %531 = arith.mulf %515, %523 : vector<8x32xf32>
    %532 = arith.addf %530, %531 : vector<8x32xf32>
    %533 = math.tanh %532 : vector<8x32xf32>
    %534 = arith.mulf %529, %533 : vector<8x32xf32>
    %535 = arith.index_cast %c6_i32_150 : i32 to index
    %c0_157 = arith.constant 0 : index
    %c0_158 = arith.constant 0 : index
    %536 = vector.load %arg8[%535, %c0_157, %c0_158] : memref<8x8x32xf32, #tpu.memory_space<vmem>>, vector<1x8x32xf32>
    %537 = vector.shape_cast %536 : vector<1x8x32xf32> to vector<8x32xf32>
    %538 = vector.shape_cast %534 : vector<8x32xf32> to vector<1x8x32xf32>
    tpu.vector_store %arg8[%535, %c0_157, %c0_158], %538 {strides = array<i32>} : memref<8x8x32xf32, #tpu.memory_space<vmem>>, vector<1x8x32xf32>,
    %c7_i32_159 = arith.constant 7 : i32
    %539 = arith.index_cast %c7_i32_159 : i32 to index
    %c0_160 = arith.constant 0 : index
    %c0_161 = arith.constant 0 : index
    %540 = vector.load %arg7[%539, %c0_160, %c0_161] : memref<8x8x128xf32, #tpu.memory_space<vmem>>, vector<1x8x128xf32>
    %541 = vector.shape_cast %540 : vector<1x8x128xf32> to vector<8x128xf32>
    %cst_162 = arith.constant dense<0.000000e+00> : vector<8x128xf32>
    %542 = tpu.matmul %534, %298, %cst_162 {dimension_numbers = #tpu.dot_dimension_numbers<[1], [0], [0], [1], [0, 0, 1, 1], [], []>} : vector<8x32xf32>, vector<32x128xf32>, vector<8x128xf32> -> vector<8x128xf32>
    %543 = arith.addf %541, %542 : vector<8x128xf32>
    %544 = vector.extract_strided_slice %543 {offsets = [0, 0], sizes = [8, 32], strides = [1, 1]} : vector<8x128xf32> to vector<8x32xf32>
    %545 = arith.negf %544 : vector<8x32xf32>
    %546 = math.exp %545 : vector<8x32xf32>
    %cst_163 = arith.constant 1.000000e+00 : f32
    %547 = vector.broadcast %cst_163 : f32 to vector<8x32xf32>
    %548 = arith.addf %547, %546 : vector<8x32xf32>
    %549 = arith.divf %547, %548 : vector<8x32xf32>
    %550 = vector.extract_strided_slice %543 {offsets = [0, 32], sizes = [8, 32], strides = [1, 1]} : vector<8x128xf32> to vector<8x32xf32>
    %551 = arith.negf %550 : vector<8x32xf32>
    %552 = math.exp %551 : vector<8x32xf32>
    %cst_164 = arith.constant 1.000000e+00 : f32
    %553 = vector.broadcast %cst_164 : f32 to vector<8x32xf32>
    %554 = arith.addf %553, %552 : vector<8x32xf32>
    %555 = arith.divf %553, %554 : vector<8x32xf32>
    %556 = vector.extract_strided_slice %543 {offsets = [0, 64], sizes = [8, 32], strides = [1, 1]} : vector<8x128xf32> to vector<8x32xf32>
    %557 = math.tanh %556 : vector<8x32xf32>
    %558 = vector.extract_strided_slice %543 {offsets = [0, 96], sizes = [8, 32], strides = [1, 1]} : vector<8x128xf32> to vector<8x32xf32>
    %559 = arith.negf %558 : vector<8x32xf32>
    %560 = math.exp %559 : vector<8x32xf32>
    %cst_165 = arith.constant 1.000000e+00 : f32
    %561 = vector.broadcast %cst_165 : f32 to vector<8x32xf32>
    %562 = arith.addf %561, %560 : vector<8x32xf32>
    %563 = arith.divf %561, %562 : vector<8x32xf32>
    %564 = arith.mulf %555, %532 : vector<8x32xf32>
    %565 = arith.mulf %549, %557 : vector<8x32xf32>
    %566 = arith.addf %564, %565 : vector<8x32xf32>
    %567 = math.tanh %566 : vector<8x32xf32>
    %568 = arith.mulf %563, %567 : vector<8x32xf32>
    %569 = arith.index_cast %c7_i32_159 : i32 to index
    %c0_166 = arith.constant 0 : index
    %c0_167 = arith.constant 0 : index
    %570 = vector.load %arg8[%569, %c0_166, %c0_167] : memref<8x8x32xf32, #tpu.memory_space<vmem>>, vector<1x8x32xf32>
    %571 = vector.shape_cast %570 : vector<1x8x32xf32> to vector<8x32xf32>
    %572 = vector.shape_cast %568 : vector<8x32xf32> to vector<1x8x32xf32>
    tpu.vector_store %arg8[%569, %c0_166, %c0_167], %572 {strides = array<i32>} : memref<8x8x32xf32, #tpu.memory_space<vmem>>, vector<1x8x32xf32>,
    %c8_i32_168 = arith.constant 8 : i32
    %c0_169 = arith.constant 0 : index
    %c0_170 = arith.constant 0 : index
    %c0_171 = arith.constant 0 : index
    %573 = vector.load %arg8[%c0_169, %c0_170, %c0_171] : memref<8x8x32xf32, #tpu.memory_space<vmem>>, vector<8x8x32xf32>
    %c0_172 = arith.constant 0 : index
    %c0_173 = arith.constant 0 : index
    %c0_174 = arith.constant 0 : index
    %574 = vector.load %arg6[%c0_172, %c0_173, %c0_174] : memref<8x8x32xf32, #tpu.memory_space<vmem>>, vector<8x8x32xf32>
    tpu.vector_store %arg6[%c0_172, %c0_173, %c0_174], %573 {strides = array<i32>} : memref<8x8x32xf32, #tpu.memory_space<vmem>>, vector<8x8x32xf32>,
    return
  }
  func.func @transform_0(%arg0: i32) -> (i32, i32, i32) {
    %c0_i32 = arith.constant 0 : i32
    %c0_i32_0 = arith.constant 0 : i32
    %c0_i32_1 = arith.constant 0 : i32
    return %c0_i32, %arg0, %c0_i32_0 : i32, i32, i32
  }
  func.func @transform_1(%arg0: i32) -> (i32, i32) {
    %c0_i32 = arith.constant 0 : i32
    %c0_i32_0 = arith.constant 0 : i32
    %c0_i32_1 = arith.constant 0 : i32
    return %c0_i32, %c0_i32_0 : i32, i32
  }
  func.func @transform_2(%arg0: i32) -> (i32, i32, i32) {
    %c0_i32 = arith.constant 0 : i32
    %c0_i32_0 = arith.constant 0 : i32
    %c0_i32_1 = arith.constant 0 : i32
    %c0_i32_2 = arith.constant 0 : i32
    return %c0_i32, %c0_i32_0, %c0_i32_1 : i32, i32, i32
  }
  func.func @transform_3(%arg0: i32) -> (i32, i32, i32) {
    %c0_i32 = arith.constant 0 : i32
    %c0_i32_0 = arith.constant 0 : i32
    %c0_i32_1 = arith.constant 0 : i32
    %c0_i32_2 = arith.constant 0 : i32
    return %c0_i32, %c0_i32_0, %c0_i32_1 : i32, i32, i32
  }
  func.func @transform_4(%arg0: i32) -> (i32, i32, i32) {
    %c0_i32 = arith.constant 0 : i32
    %c0_i32_0 = arith.constant 0 : i32
    %c0_i32_1 = arith.constant 0 : i32
    %c0_i32_2 = arith.constant 0 : i32
    return %c0_i32, %c0_i32_0, %c0_i32_1 : i32, i32, i32
  }
  func.func @transform_5(%arg0: i32) -> (i32, i32, i32) {
    %c0_i32 = arith.constant 0 : i32
    %c0_i32_0 = arith.constant 0 : i32
    %c0_i32_1 = arith.constant 0 : i32
    return %c0_i32, %arg0, %c0_i32_0 : i32, i32, i32
  }
}

</mosaic_0001>

<llo_original>
// kernel: decoder_forward.3
$region0: #{decoder_forward.3}
  #allocation0 [shape = 'u32[]', space=smem, size = 0x4, offset = 0x4, fixed_abs, tag = 'smem constant byte address 0x4 - core index']
  #allocation1 [shape = 'u32[72,128]{1,0:T(1,128)}', space=vmem, size = 0x9000, scoped, tag = 'internal scratch']
  %s0 = inlined_call_operand.vmem [shape: f32[16,32], index: 0, kind: input, shape index: {}]
  %s1 = inlined_call_operand.vmem [shape: f32[32,128], index: 1, kind: input, shape index: {}]
  %s2 = inlined_call_operand.vmem [shape: f32[1,128], index: 2, kind: input, shape index: {}]
  %s3 = inlined_call_operand.vmem [shape: f32[16,128], index: 3, kind: output, shape index: {}]
  %s4 = sld [smem:[#allocation0]]
  $region22: #{decoder_forward.3} parent=0
    _
  %s6 = ssub.s32 1, %s4
  %s7 = scalar_select 0, %s6, %s4
  // Predicated region
  $region2: #{decoder_forward.3} parent=0 // pred_check
    _
  $region3: #{decoder_forward.3} parent=0 // pred_check_branch
    %9 = sbr.rel (0) target = $region5
  $region4: #{decoder_forward.3} parent=0 // pred_region
    _
  $region5: #{decoder_forward.3} parent=0 // pred_fallthru
    _
  // Predicated region
  $region6: #{decoder_forward.3} parent=0 // pred_check
    _
  $region7: #{decoder_forward.3} parent=0 // pred_check_branch
    %11 = sbr.rel (0) target = $region9
  $region8: #{decoder_forward.3} parent=0 // pred_region
    _
  $region9: #{decoder_forward.3} parent=0 // pred_fallthru
    _
  // Predicated region
  $region10: #{decoder_forward.3} parent=0 // pred_check
    _
  $region11: #{decoder_forward.3} parent=0 // pred_check_branch
    %13 = sbr.rel (0) target = $region13
  $region12: #{decoder_forward.3} parent=0 // pred_region
    _
  $region13: #{decoder_forward.3} parent=0 // pred_fallthru
    _
  %v14 = vld [vmem:[%s0] sm:$0xff]
  %v15 = vld [vmem:[%s0 + $0x8] sm:$0xff]
  %v16 = vld [vmem:[%s1] sm:$0xff]
  %v17 = vld [vmem:[%s1 + $0x8] sm:$0xff]
  %v18 = vld [vmem:[%s1 + $0x10] sm:$0xff]
  %v19 = vld [vmem:[%s1 + $0x18] sm:$0xff]
  %v20 = vld [vmem:[%s2] sm:$0x1]
  %v22 = vperm.slane %v20, 0
  %vm24 = vcmask 261120
  %v26 = vsel %vm24, %v14, 0
  %v29 = vsel %vm24, %v15, 0
  %31 = vmatpush.msra.mxu0 0.0
  %32 = vmatpush.msra.mxu0 0.0
  %33 = vmatpush.msra.mxu0 0.0
  %34 = vmatpush.msra.mxu0 0.0
  %35 = vmatpush.msra.mxu0 0.0
  %36 = vmatpush.msra.mxu0 0.0
  %37 = vmatpush.msra.mxu0 0.0
  %38 = vmatpush.msra.mxu0 0.0
  %39 = vmatpush.msra.mxu0 0.0
  %40 = vmatpush.msra.mxu0 0.0
  %41 = vmatpush.msra.mxu0 0.0
  %42 = vmatpush.msra.mxu0 0.0
  %43 = vmatpush.msra.mxu0 %v19
  %44 = vmatpush.msra.mxu0 %v18
  %45 = vmatpush.msra.mxu0 %v17
  %46 = vmatpush.msra.mxu0 %v16
  %47 = vmatmul.f32.gmra.mxu0 %v26
  %v48 = vpop.f32.mrf.mxu0
  %v49 = vadd.f32 %v22, %v48
  %50 = vmatmul.f32.gmra.mxu0 %v29
  %v51 = vpop.f32.mrf.mxu0
  %v52 = vadd.f32 %v22, %v51
  %53 = vdwg.mxu0
  %54 = vst [vmem:[%s3] sm:$0xff] %v49
  %55 = vst [vmem:[%s3 + $0x8] sm:$0xff] %v52
  // Predicated region
  $region14: #{decoder_forward.3} parent=0 // pred_check
    _
  $region15: #{decoder_forward.3} parent=0 // pred_check_branch
    %57 = sbr.rel (0) target = $region17
  $region16: #{decoder_forward.3} parent=0 // pred_region
    _
  $region17: #{decoder_forward.3} parent=0 // pred_fallthru
    _
  // Predicated region
  $region18: #{decoder_forward.3} parent=0 // pred_check
    _
  $region19: #{decoder_forward.3} parent=0 // pred_check_branch
    %59 = sbr.rel (0) target = $region21
  $region20: #{decoder_forward.3} parent=0 // pred_region
    _
  $region21: #{decoder_forward.3} parent=0 // pred_fallthru
    _

// kernel: decoder_forward.2
$region0: #{decoder_forward.2}
  #allocation0 [shape = 'u32[]', space=smem, size = 0x4, offset = 0x4, fixed_abs, tag = 'smem constant byte address 0x4 - core index']
  #allocation1 [shape = 'u32[72,128]{1,0:T(1,128)}', space=vmem, size = 0x9000, scoped, tag = 'internal scratch']
  #allocation2 [shape = 'f32[8,8,128]{2,1,0:T(8,128)}', space=vmem, size = 0x8000, scoped, tag = 'scratch operand']
  #allocation3 [shape = 'f32[8,8,32]{2,1,0:T(8,128)}', space=vmem, size = 0x8000, scoped, tag = 'scratch operand']
  %s0 = inlined_call_operand.vmem [shape: f32[8,8,32], index: 0, kind: input, shape index: {}]
  %s1 = inlined_call_operand.vmem [shape: f32[32,128], index: 1, kind: input, shape index: {}]
  %s2 = inlined_call_operand.vmem [shape: f32[1,32,128], index: 2, kind: input, shape index: {}]
  %s3 = inlined_call_operand.vmem [shape: f32[2,32,128], index: 3, kind: input, shape index: {}]
  %s4 = inlined_call_operand.vmem [shape: f32[2,1,128], index: 4, kind: input, shape index: {}]
  %s5 = inlined_call_operand.vmem [shape: f32[8,8,32], index: 5, kind: output, shape index: {}]
  %s6 = sld [smem:[#allocation0]]
  $region30: #{decoder_forward.2} parent=0
    _
  %s8 = ssub.s32 1, %s6
  %s9 = scalar_select 0, %s8, %s6
  // Predicated region
  $region2: #{decoder_forward.2} parent=0 // pred_check
    _
  $region3: #{decoder_forward.2} parent=0 // pred_check_branch
    %11 = sbr.rel (0) target = $region5
  $region4: #{decoder_forward.2} parent=0 // pred_region
    _
  $region5: #{decoder_forward.2} parent=0 // pred_fallthru
    _
  // Predicated region
  $region6: #{decoder_forward.2} parent=0 // pred_check
    _
  $region7: #{decoder_forward.2} parent=0 // pred_check_branch
    %13 = sbr.rel (0) target = $region9
  $region8: #{decoder_forward.2} parent=0 // pred_region
    _
  $region9: #{decoder_forward.2} parent=0 // pred_fallthru
    _
  // Predicated region
  $region10: #{decoder_forward.2} parent=0 // pred_check
    _
  $region11: #{decoder_forward.2} parent=0 // pred_check_branch
    %15 = sbr.rel (0) target = $region13
  $region12: #{decoder_forward.2} parent=0 // pred_region
    _
  $region13: #{decoder_forward.2} parent=0 // pred_fallthru
    _
  // Predicated region
  $region14: #{decoder_forward.2} parent=0 // pred_check
    _
  $region15: #{decoder_forward.2} parent=0 // pred_check_branch
    %17 = sbr.rel (0) target = $region17
  $region16: #{decoder_forward.2} parent=0 // pred_region
    _
  $region17: #{decoder_forward.2} parent=0 // pred_fallthru
    _
  // Predicated region
  $region18: #{decoder_forward.2} parent=0 // pred_check
    _
  $region19: #{decoder_forward.2} parent=0 // pred_check_branch
    %19 = sbr.rel (0) target = $region21
  $region20: #{decoder_forward.2} parent=0 // pred_region
    _
  $region21: #{decoder_forward.2} parent=0 // pred_fallthru
    _
  %v20 = vld [vmem:[%s0] sm:$0xff]
  %v21 = vld [vmem:[%s0 + $0x8] sm:$0xff]
  %v22 = vld [vmem:[%s0 + $0x10] sm:$0xff]
  %v23 = vld [vmem:[%s0 + $0x18] sm:$0xff]
  %v24 = vld [vmem:[%s0 + $0x20] sm:$0xff]
  %v25 = vld [vmem:[%s0 + $0x28] sm:$0xff]
  %v26 = vld [vmem:[%s0 + $0x30] sm:$0xff]
  %v27 = vld [vmem:[%s0 + $0x38] sm:$0xff]
  %v28 = vld [vmem:[%s1] sm:$0xff]
  %v29 = vld [vmem:[%s1 + $0x8] sm:$0xff]
  %v30 = vld [vmem:[%s1 + $0x10] sm:$0xff]
  %v31 = vld [vmem:[%s1 + $0x18] sm:$0xff]
  %v32 = vld [vmem:[%s4] sm:$0x1]
  %v34 = vperm.slane %v32, 0
  %vm36 = vcmask 261120
  %v38 = vsel %vm36, %v20, 0
  %v41 = vsel %vm36, %v21, 0
  %v44 = vsel %vm36, %v22, 0
  %v47 = vsel %vm36, %v23, 0
  %v50 = vsel %vm36, %v24, 0
  %v53 = vsel %vm36, %v25, 0
  %v56 = vsel %vm36, %v26, 0
  %v59 = vsel %vm36, %v27, 0
  %61 = vmatpush.msra.mxu0 0.0
  %62 = vmatpush.msra.mxu0 0.0
  %63 = vmatpush.msra.mxu0 0.0
  %64 = vmatpush.msra.mxu0 0.0
  %65 = vmatpush.msra.mxu0 0.0
  %66 = vmatpush.msra.mxu0 0.0
  %67 = vmatpush.msra.mxu0 0.0
  %68 = vmatpush.msra.mxu0 0.0
  %69 = vmatpush.msra.mxu0 0.0
  %70 = vmatpush.msra.mxu0 0.0
  %71 = vmatpush.msra.mxu0 0.0
  %72 = vmatpush.msra.mxu0 0.0
  %73 = vmatpush.msra.mxu0 %v31
  %74 = vmatpush.msra.mxu0 %v30
  %75 = vmatpush.msra.mxu0 %v29
  %76 = vmatpush.msra.mxu0 %v28
  %77 = vmatmul.f32.gmra.mxu0 %v38
  %v78 = vpop.f32.mrf.mxu0
  %v79 = vadd.f32 %v34, %v78
  %80 = vmatmul.f32.gmra.mxu0 %v41
  %v81 = vpop.f32.mrf.mxu0
  %v82 = vadd.f32 %v34, %v81
  %83 = vmatmul.f32.gmra.mxu0 %v44
  %v84 = vpop.f32.mrf.mxu0
  %v85 = vadd.f32 %v34, %v84
  %86 = vmatmul.f32.gmra.mxu0 %v47
  %v87 = vpop.f32.mrf.mxu0
  %v88 = vadd.f32 %v34, %v87
  %89 = vmatmul.f32.gmra.mxu0 %v50
  %v90 = vpop.f32.mrf.mxu0
  %v91 = vadd.f32 %v34, %v90
  %92 = vmatmul.f32.gmra.mxu0 %v53
  %v93 = vpop.f32.mrf.mxu0
  %v94 = vadd.f32 %v34, %v93
  %95 = vmatmul.f32.gmra.mxu0 %v56
  %v96 = vpop.f32.mrf.mxu0
  %v97 = vadd.f32 %v34, %v96
  %98 = vmatmul.f32.gmra.mxu0 %v59
  %v99 = vpop.f32.mrf.mxu0
  %v100 = vadd.f32 %v34, %v99
  %101 = vdwg.mxu0
  %102 = vst [vmem:[#allocation2] sm:$0xff] %v79
  %103 = vst [vmem:[#allocation2 + $0x8] sm:$0xff] %v82
  %104 = vst [vmem:[#allocation2 + $0x10] sm:$0xff] %v85
  %105 = vst [vmem:[#allocation2 + $0x18] sm:$0xff] %v88
  %106 = vst [vmem:[#allocation2 + $0x20] sm:$0xff] %v91
  %107 = vst [vmem:[#allocation2 + $0x28] sm:$0xff] %v94
  %108 = vst [vmem:[#allocation2 + $0x30] sm:$0xff] %v97
  %109 = vst [vmem:[#allocation2 + $0x38] sm:$0xff] %v100
  %v110 = vld [vmem:[%s3] sm:$0xff]
  %v111 = vld [vmem:[%s3 + $0x8] sm:$0xff]
  %v112 = vld [vmem:[%s3 + $0x10] sm:$0xff]
  %v113 = vld [vmem:[%s3 + $0x18] sm:$0xff]
  %v114 = vld [vmem:[#allocation2] sm:$0xff]
  %v116 = vsel %vm36, 0.0, 0
  %118 = vmatpush.msra.mxu0 0.0
  %119 = vmatpush.msra.mxu0 0.0
  %120 = vmatpush.msra.mxu0 0.0
  %121 = vmatpush.msra.mxu0 0.0
  %122 = vmatpush.msra.mxu0 0.0
  %123 = vmatpush.msra.mxu0 0.0
  %124 = vmatpush.msra.mxu0 0.0
  %125 = vmatpush.msra.mxu0 0.0
  %126 = vmatpush.msra.mxu0 0.0
  %127 = vmatpush.msra.mxu0 0.0
  %128 = vmatpush.msra.mxu0 0.0
  %129 = vmatpush.msra.mxu0 0.0
  %130 = vmatpush.msra.mxu0 %v113
  %131 = vmatpush.msra.mxu0 %v112
  %132 = vmatpush.msra.mxu0 %v111
  %133 = vmatpush.msra.mxu0 %v110
  %134 = vmatmul.f32.gmra.mxu0 %v116
  %v135 = vpop.f32.mrf.mxu0
  %v136 = vadd.f32 0.0, %v135
  %137 = vdwg.mxu0
  %v138 = vadd.f32 %v114, %v136
  %v139 = vxor.u32 %v138, 2147483648
  %v140 = vmul.f32 %v139, 1.442695
  %v141 = vpow.pop %v140
  %v142 = vadd.f32 %v141, 1.0
  %v143 = vrcp.pop %v142
  %v144 = vmul.f32 %v142, %v143
  %v145 = vsub.f32 1.0, %v144
  %v146 = vmul.f32 %v143, %v145
  %v147 = vadd.f32 %v143, %v146
  %vm148 = vweird.f32 %v142
  %vm149 = vweird.f32 %v143
  %vm150 = vmor %vm148, %vm149
  %v151 = vsel %vm150, %v143, %v147
  %v152 = vand.u32 2147483647, %v142
  %vm153 = vcmp.eq.f32.partialorder %v152, 8.507059e+37
  %v154 = vand.u32 %v142, 2147483648
  %v155 = vor.u32 1.1754944e-38, %v154
  %v156 = vsel %vm153, %v155, %v151
  %v157 = vmul.f32 1.0, %v156
  %v158 = vtanh.pop %v138
  %v159 = vmul.f32 %v157, 0.0
  %161 = vrot.lane.b32.xlu0 %v158, 64
  %v162 = vpop.permute.xlu0 %161
  %v164 = vmul.f32 %v157, %v162
  %166 = vrot.lane.b32.xlu0 %v164, 32
  %v167 = vpop.permute.xlu0 %166
  %v169 = vadd.f32 %v159, %v167
  %v170 = vtanh.pop %v169
  %172 = vrot.lane.b32.xlu0 %v170, 64
  %v173 = vpop.permute.xlu0 %172
  %v175 = vmul.f32 %v157, %v173
  %177 = vrot.lane.b32.xlu0 %v175, 32
  %v178 = vpop.permute.xlu0 %177
  %180 = vst.msk [vmem:[#allocation3] sm:$0xff] %vm36, %v178
  %s181 = scalar_lea.vmem [#allocation2], 8
  %v182 = vld [vmem:[%s181] sm:$0xff]
  %v183 = vsel %vm36, %v178, 0
  %185 = vmatpush.msra.mxu0 0.0
  %186 = vmatpush.msra.mxu0 0.0
  %187 = vmatpush.msra.mxu0 0.0
  %188 = vmatpush.msra.mxu0 0.0
  %189 = vmatpush.msra.mxu0 0.0
  %190 = vmatpush.msra.mxu0 0.0
  %191 = vmatpush.msra.mxu0 0.0
  %192 = vmatpush.msra.mxu0 0.0
  %193 = vmatpush.msra.mxu0 0.0
  %194 = vmatpush.msra.mxu0 0.0
  %195 = vmatpush.msra.mxu0 0.0
  %196 = vmatpush.msra.mxu0 0.0
  %197 = vmatpush.msra.mxu0 %v113
  %198 = vmatpush.msra.mxu0 %v112
  %199 = vmatpush.msra.mxu0 %v111
  %200 = vmatpush.msra.mxu0 %v110
  %201 = vmatmul.f32.gmra.mxu0 %v183
  %v202 = vpop.f32.mrf.mxu0
  %v203 = vadd.f32 0.0, %v202
  %204 = vdwg.mxu0
  %v205 = vadd.f32 %v182, %v203
  %v206 = vxor.u32 %v205, 2147483648
  %v207 = vmul.f32 %v206, 1.442695
  %v208 = vpow.pop %v207
  %v209 = vadd.f32 %v208, 1.0
  %v210 = vrcp.pop %v209
  %v211 = vmul.f32 %v209, %v210
  %v212 = vsub.f32 1.0, %v211
  %v213 = vmul.f32 %v210, %v212
  %v214 = vadd.f32 %v210, %v213
  %vm215 = vweird.f32 %v209
  %vm216 = vweird.f32 %v210
  %vm217 = vmor %vm215, %vm216
  %v218 = vsel %vm217, %v210, %v214
  %v219 = vand.u32 2147483647, %v209
  %vm220 = vcmp.eq.f32.partialorder %v219, 8.507059e+37
  %v221 = vand.u32 %v209, 2147483648
  %v222 = vor.u32 1.1754944e-38, %v221
  %v223 = vsel %vm220, %v222, %v218
  %v224 = vmul.f32 1.0, %v223
  %v225 = vtanh.pop %v205
  %v226 = vmul.f32 %v224, %v169
  %228 = vrot.lane.b32.xlu0 %v225, 64
  %v229 = vpop.permute.xlu0 %228
  %v231 = vmul.f32 %v224, %v229
  %233 = vrot.lane.b32.xlu0 %v231, 32
  %v234 = vpop.permute.xlu0 %233
  %v236 = vadd.f32 %v226, %v234
  %v237 = vtanh.pop %v236
  %239 = vrot.lane.b32.xlu0 %v237, 64
  %v240 = vpop.permute.xlu0 %239
  %v242 = vmul.f32 %v224, %v240
  %244 = vrot.lane.b32.xlu0 %v242, 32
  %v245 = vpop.permute.xlu0 %244
  %s247 = scalar_lea.vmem [#allocation3], 8
  %248 = vst.msk [vmem:[%s247] sm:$0xff] %vm36, %v245
  %s249 = scalar_lea.vmem [#allocation2], 16
  %v250 = vld [vmem:[%s249] sm:$0xff]
  %v251 = vsel %vm36, %v245, 0
  %253 = vmatpush.msra.mxu0 0.0
  %254 = vmatpush.msra.mxu0 0.0
  %255 = vmatpush.msra.mxu0 0.0
  %256 = vmatpush.msra.mxu0 0.0
  %257 = vmatpush.msra.mxu0 0.0
  %258 = vmatpush.msra.mxu0 0.0
  %259 = vmatpush.msra.mxu0 0.0
  %260 = vmatpush.msra.mxu0 0.0
  %261 = vmatpush.msra.mxu0 0.0
  %262 = vmatpush.msra.mxu0 0.0
  %263 = vmatpush.msra.mxu0 0.0
  %264 = vmatpush.msra.mxu0 0.0
  %265 = vmatpush.msra.mxu0 %v113
  %266 = vmatpush.msra.mxu0 %v112
  %267 = vmatpush.msra.mxu0 %v111
  %268 = vmatpush.msra.mxu0 %v110
  %269 = vmatmul.f32.gmra.mxu0 %v251
  %v270 = vpop.f32.mrf.mxu0
  %v271 = vadd.f32 0.0, %v270
  %272 = vdwg.mxu0
  %v273 = vadd.f32 %v250, %v271
  %v274 = vxor.u32 %v273, 2147483648
  %v275 = vmul.f32 %v274, 1.442695
  %v276 = vpow.pop %v275
  %v277 = vadd.f32 %v276, 1.0
  %v278 = vrcp.pop %v277
  %v279 = vmul.f32 %v277, %v278
  %v280 = vsub.f32 1.0, %v279
  %v281 = vmul.f32 %v278, %v280
  %v282 = vadd.f32 %v278, %v281
  %vm283 = vweird.f32 %v277
  %vm284 = vweird.f32 %v278
  %vm285 = vmor %vm283, %vm284
  %v286 = vsel %vm285, %v278, %v282
  %v287 = vand.u32 2147483647, %v277
  %vm288 = vcmp.eq.f32.partialorder %v287, 8.507059e+37
  %v289 = vand.u32 %v277, 2147483648
  %v290 = vor.u32 1.1754944e-38, %v289
  %v291 = vsel %vm288, %v290, %v286
  %v292 = vmul.f32 1.0, %v291
  %v293 = vtanh.pop %v273
  %v294 = vmul.f32 %v292, %v236
  %296 = vrot.lane.b32.xlu0 %v293, 64
  %v297 = vpop.permute.xlu0 %296
  %v299 = vmul.f32 %v292, %v297
  %301 = vrot.lane.b32.xlu0 %v299, 32
  %v302 = vpop.permute.xlu0 %301
  %v304 = vadd.f32 %v294, %v302
  %v305 = vtanh.pop %v304
  %307 = vrot.lane.b32.xlu0 %v305, 64
  %v308 = vpop.permute.xlu0 %307
  %v310 = vmul.f32 %v292, %v308
  %312 = vrot.lane.b32.xlu0 %v310, 32
  %v313 = vpop.permute.xlu0 %312
  %s315 = scalar_lea.vmem [#allocation3], 16
  %316 = vst.msk [vmem:[%s315] sm:$0xff] %vm36, %v313
  %s317 = scalar_lea.vmem [#allocation2], 24
  %v318 = vld [vmem:[%s317] sm:$0xff]
  %v319 = vsel %vm36, %v313, 0
  %321 = vmatpush.msra.mxu0 0.0
  %322 = vmatpush.msra.mxu0 0.0
  %323 = vmatpush.msra.mxu0 0.0
  %324 = vmatpush.msra.mxu0 0.0
  %325 = vmatpush.msra.mxu0 0.0
  %326 = vmatpush.msra.mxu0 0.0
  %327 = vmatpush.msra.mxu0 0.0
  %328 = vmatpush.msra.mxu0 0.0
  %329 = vmatpush.msra.mxu0 0.0
  %330 = vmatpush.msra.mxu0 0.0
  %331 = vmatpush.msra.mxu0 0.0
  %332 = vmatpush.msra.mxu0 0.0
  %333 = vmatpush.msra.mxu0 %v113
  %334 = vmatpush.msra.mxu0 %v112
  %335 = vmatpush.msra.mxu0 %v111
  %336 = vmatpush.msra.mxu0 %v110
  %337 = vmatmul.f32.gmra.mxu0 %v319
  %v338 = vpop.f32.mrf.mxu0
  %v339 = vadd.f32 0.0, %v338
  %340 = vdwg.mxu0
  %v341 = vadd.f32 %v318, %v339
  %v342 = vxor.u32 %v341, 2147483648
  %v343 = vmul.f32 %v342, 1.442695
  %v344 = vpow.pop %v343
  %v345 = vadd.f32 %v344, 1.0
  %v346 = vrcp.pop %v345
  %v347 = vmul.f32 %v345, %v346
  %v348 = vsub.f32 1.0, %v347
  %v349 = vmul.f32 %v346, %v348
  %v350 = vadd.f32 %v346, %v349
  %vm351 = vweird.f32 %v345
  %vm352 = vweird.f32 %v346
  %vm353 = vmor %vm351, %vm352
  %v354 = vsel %vm353, %v346, %v350
  %v355 = vand.u32 2147483647, %v345
  %vm356 = vcmp.eq.f32.partialorder %v355, 8.507059e+37
  %v357 = vand.u32 %v345, 2147483648
  %v358 = vor.u32 1.1754944e-38, %v357
  %v359 = vsel %vm356, %v358, %v354
  %v360 = vmul.f32 1.0, %v359
  %v361 = vtanh.pop %v341
  %v362 = vmul.f32 %v360, %v304
  %364 = vrot.lane.b32.xlu0 %v361, 64
  %v365 = vpop.permute.xlu0 %364
  %v367 = vmul.f32 %v360, %v365
  %369 = vrot.lane.b32.xlu0 %v367, 32
  %v370 = vpop.permute.xlu0 %369
  %v372 = vadd.f32 %v362, %v370
  %v373 = vtanh.pop %v372
  %375 = vrot.lane.b32.xlu0 %v373, 64
  %v376 = vpop.permute.xlu0 %375
  %v378 = vmul.f32 %v360, %v376
  %380 = vrot.lane.b32.xlu0 %v378, 32
  %v381 = vpop.permute.xlu0 %380
  %s383 = scalar_lea.vmem [#allocation3], 24
  %384 = vst.msk [vmem:[%s383] sm:$0xff] %vm36, %v381
  %s385 = scalar_lea.vmem [#allocation2], 32
  %v386 = vld [vmem:[%s385] sm:$0xff]
  %v387 = vsel %vm36, %v381, 0
  %389 = vmatpush.msra.mxu0 0.0
  %390 = vmatpush.msra.mxu0 0.0
  %391 = vmatpush.msra.mxu0 0.0
  %392 = vmatpush.msra.mxu0 0.0
  %393 = vmatpush.msra.mxu0 0.0
  %394 = vmatpush.msra.mxu0 0.0
  %395 = vmatpush.msra.mxu0 0.0
  %396 = vmatpush.msra.mxu0 0.0
  %397 = vmatpush.msra.mxu0 0.0
  %398 = vmatpush.msra.mxu0 0.0
  %399 = vmatpush.msra.mxu0 0.0
  %400 = vmatpush.msra.mxu0 0.0
  %401 = vmatpush.msra.mxu0 %v113
  %402 = vmatpush.msra.mxu0 %v112
  %403 = vmatpush.msra.mxu0 %v111
  %404 = vmatpush.msra.mxu0 %v110
  %405 = vmatmul.f32.gmra.mxu0 %v387
  %v406 = vpop.f32.mrf.mxu0
  %v407 = vadd.f32 0.0, %v406
  %408 = vdwg.mxu0
  %v409 = vadd.f32 %v386, %v407
  %v410 = vxor.u32 %v409, 2147483648
  %v411 = vmul.f32 %v410, 1.442695
  %v412 = vpow.pop %v411
  %v413 = vadd.f32 %v412, 1.0
  %v414 = vrcp.pop %v413
  %v415 = vmul.f32 %v413, %v414
  %v416 = vsub.f32 1.0, %v415
  %v417 = vmul.f32 %v414, %v416
  %v418 = vadd.f32 %v414, %v417
  %vm419 = vweird.f32 %v413
  %vm420 = vweird.f32 %v414
  %vm421 = vmor %vm419, %vm420
  %v422 = vsel %vm421, %v414, %v418
  %v423 = vand.u32 2147483647, %v413
  %vm424 = vcmp.eq.f32.partialorder %v423, 8.507059e+37
  %v425 = vand.u32 %v413, 2147483648
  %v426 = vor.u32 1.1754944e-38, %v425
  %v427 = vsel %vm424, %v426, %v422
  %v428 = vmul.f32 1.0, %v427
  %v429 = vtanh.pop %v409
  %v430 = vmul.f32 %v428, %v372
  %432 = vrot.lane.b32.xlu0 %v429, 64
  %v433 = vpop.permute.xlu0 %432
  %v435 = vmul.f32 %v428, %v433
  %437 = vrot.lane.b32.xlu0 %v435, 32
  %v438 = vpop.permute.xlu0 %437
  %v440 = vadd.f32 %v430, %v438
  %v441 = vtanh.pop %v440
  %443 = vrot.lane.b32.xlu0 %v441, 64
  %v444 = vpop.permute.xlu0 %443
  %v446 = vmul.f32 %v428, %v444
  %448 = vrot.lane.b32.xlu0 %v446, 32
  %v449 = vpop.permute.xlu0 %448
  %s451 = scalar_lea.vmem [#allocation3], 32
  %452 = vst.msk [vmem:[%s451] sm:$0xff] %vm36, %v449
  %s453 = scalar_lea.vmem [#allocation2], 40
  %v454 = vld [vmem:[%s453] sm:$0xff]
  %v455 = vsel %vm36, %v449, 0
  %457 = vmatpush.msra.mxu0 0.0
  %458 = vmatpush.msra.mxu0 0.0
  %459 = vmatpush.msra.mxu0 0.0
  %460 = vmatpush.msra.mxu0 0.0
  %461 = vmatpush.msra.mxu0 0.0
  %462 = vmatpush.msra.mxu0 0.0
  %463 = vmatpush.msra.mxu0 0.0
  %464 = vmatpush.msra.mxu0 0.0
  %465 = vmatpush.msra.mxu0 0.0
  %466 = vmatpush.msra.mxu0 0.0
  %467 = vmatpush.msra.mxu0 0.0
  %468 = vmatpush.msra.mxu0 0.0
  %469 = vmatpush.msra.mxu0 %v113
  %470 = vmatpush.msra.mxu0 %v112
  %471 = vmatpush.msra.mxu0 %v111
  %472 = vmatpush.msra.mxu0 %v110
  %473 = vmatmul.f32.gmra.mxu0 %v455
  %v474 = vpop.f32.mrf.mxu0
  %v475 = vadd.f32 0.0, %v474
  %476 = vdwg.mxu0
  %v477 = vadd.f32 %v454, %v475
  %v478 = vxor.u32 %v477, 2147483648
  %v479 = vmul.f32 %v478, 1.442695
  %v480 = vpow.pop %v479
  %v481 = vadd.f32 %v480, 1.0
  %v482 = vrcp.pop %v481
  %v483 = vmul.f32 %v481, %v482
  %v484 = vsub.f32 1.0, %v483
  %v485 = vmul.f32 %v482, %v484
  %v486 = vadd.f32 %v482, %v485
  %vm487 = vweird.f32 %v481
  %vm488 = vweird.f32 %v482
  %vm489 = vmor %vm487, %vm488
  %v490 = vsel %vm489, %v482, %v486
  %v491 = vand.u32 2147483647, %v481
  %vm492 = vcmp.eq.f32.partialorder %v491, 8.507059e+37
  %v493 = vand.u32 %v481, 2147483648
  %v494 = vor.u32 1.1754944e-38, %v493
  %v495 = vsel %vm492, %v494, %v490
  %v496 = vmul.f32 1.0, %v495
  %v497 = vtanh.pop %v477
  %v498 = vmul.f32 %v496, %v440
  %500 = vrot.lane.b32.xlu0 %v497, 64
  %v501 = vpop.permute.xlu0 %500
  %v503 = vmul.f32 %v496, %v501
  %505 = vrot.lane.b32.xlu0 %v503, 32
  %v506 = vpop.permute.xlu0 %505
  %v508 = vadd.f32 %v498, %v506
  %v509 = vtanh.pop %v508
  %511 = vrot.lane.b32.xlu0 %v509, 64
  %v512 = vpop.permute.xlu0 %511
  %v514 = vmul.f32 %v496, %v512
  %516 = vrot.lane.b32.xlu0 %v514, 32
  %v517 = vpop.permute.xlu0 %516
  %s519 = scalar_lea.vmem [#allocation3], 40
  %520 = vst.msk [vmem:[%s519] sm:$0xff] %vm36, %v517
  %s521 = scalar_lea.vmem [#allocation2], 48
  %v522 = vld [vmem:[%s521] sm:$0xff]
  %v523 = vsel %vm36, %v517, 0
  %525 = vmatpush.msra.mxu0 0.0
  %526 = vmatpush.msra.mxu0 0.0
  %527 = vmatpush.msra.mxu0 0.0
  %528 = vmatpush.msra.mxu0 0.0
  %529 = vmatpush.msra.mxu0 0.0
  %530 = vmatpush.msra.mxu0 0.0
  %531 = vmatpush.msra.mxu0 0.0
  %532 = vmatpush.msra.mxu0 0.0
  %533 = vmatpush.msra.mxu0 0.0
  %534 = vmatpush.msra.mxu0 0.0
  %535 = vmatpush.msra.mxu0 0.0
  %536 = vmatpush.msra.mxu0 0.0
  %537 = vmatpush.msra.mxu0 %v113
  %538 = vmatpush.msra.mxu0 %v112
  %539 = vmatpush.msra.mxu0 %v111
  %540 = vmatpush.msra.mxu0 %v110
  %541 = vmatmul.f32.gmra.mxu0 %v523
  %v542 = vpop.f32.mrf.mxu0
  %v543 = vadd.f32 0.0, %v542
  %544 = vdwg.mxu0
  %v545 = vadd.f32 %v522, %v543
  %v546 = vxor.u32 %v545, 2147483648
  %v547 = vmul.f32 %v546, 1.442695
  %v548 = vpow.pop %v547
  %v549 = vadd.f32 %v548, 1.0
  %v550 = vrcp.pop %v549
  %v551 = vmul.f32 %v549, %v550
  %v552 = vsub.f32 1.0, %v551
  %v553 = vmul.f32 %v550, %v552
  %v554 = vadd.f32 %v550, %v553
  %vm555 = vweird.f32 %v549
  %vm556 = vweird.f32 %v550
  %vm557 = vmor %vm555, %vm556
  %v558 = vsel %vm557, %v550, %v554
  %v559 = vand.u32 2147483647, %v549
  %vm560 = vcmp.eq.f32.partialorder %v559, 8.507059e+37
  %v561 = vand.u32 %v549, 2147483648
  %v562 = vor.u32 1.1754944e-38, %v561
  %v563 = vsel %vm560, %v562, %v558
  %v564 = vmul.f32 1.0, %v563
  %v565 = vtanh.pop %v545
  %v566 = vmul.f32 %v564, %v508
  %568 = vrot.lane.b32.xlu0 %v565, 64
  %v569 = vpop.permute.xlu0 %568
  %v571 = vmul.f32 %v564, %v569
  %573 = vrot.lane.b32.xlu0 %v571, 32
  %v574 = vpop.permute.xlu0 %573
  %v576 = vadd.f32 %v566, %v574
  %v577 = vtanh.pop %v576
  %579 = vrot.lane.b32.xlu0 %v577, 64
  %v580 = vpop.permute.xlu0 %579
  %v582 = vmul.f32 %v564, %v580
  %584 = vrot.lane.b32.xlu0 %v582, 32
  %v585 = vpop.permute.xlu0 %584
  %s587 = scalar_lea.vmem [#allocation3], 48
  %588 = vst.msk [vmem:[%s587] sm:$0xff] %vm36, %v585
  %s589 = scalar_lea.vmem [#allocation2], 56
  %v590 = vld [vmem:[%s589] sm:$0xff]
  %v591 = vsel %vm36, %v585, 0
  %593 = vmatpush.msra.mxu0 0.0
  %594 = vmatpush.msra.mxu0 0.0
  %595 = vmatpush.msra.mxu0 0.0
  %596 = vmatpush.msra.mxu0 0.0
  %597 = vmatpush.msra.mxu0 0.0
  %598 = vmatpush.msra.mxu0 0.0
  %599 = vmatpush.msra.mxu0 0.0
  %600 = vmatpush.msra.mxu0 0.0
  %601 = vmatpush.msra.mxu0 0.0
  %602 = vmatpush.msra.mxu0 0.0
  %603 = vmatpush.msra.mxu0 0.0
  %604 = vmatpush.msra.mxu0 0.0
  %605 = vmatpush.msra.mxu0 %v113
  %606 = vmatpush.msra.mxu0 %v112
  %607 = vmatpush.msra.mxu0 %v111
  %608 = vmatpush.msra.mxu0 %v110
  %609 = vmatmul.f32.gmra.mxu0 %v591
  %v610 = vpop.f32.mrf.mxu0
  %v611 = vadd.f32 0.0, %v610
  %612 = vdwg.mxu0
  %v613 = vadd.f32 %v590, %v611
  %v614 = vxor.u32 %v613, 2147483648
  %v615 = vmul.f32 %v614, 1.442695
  %v616 = vpow.pop %v615
  %v617 = vadd.f32 %v616, 1.0
  %v618 = vrcp.pop %v617
  %v619 = vmul.f32 %v617, %v618
  %v620 = vsub.f32 1.0, %v619
  %v621 = vmul.f32 %v618, %v620
  %v622 = vadd.f32 %v618, %v621
  %vm623 = vweird.f32 %v617
  %vm624 = vweird.f32 %v618
  %vm625 = vmor %vm623, %vm624
  %v626 = vsel %vm625, %v618, %v622
  %v627 = vand.u32 2147483647, %v617
  %vm628 = vcmp.eq.f32.partialorder %v627, 8.507059e+37
  %v629 = vand.u32 %v617, 2147483648
  %v630 = vor.u32 1.1754944e-38, %v629
  %v631 = vsel %vm628, %v630, %v626
  %v632 = vmul.f32 1.0, %v631
  %v633 = vtanh.pop %v613
  %v634 = vmul.f32 %v632, %v576
  %636 = vrot.lane.b32.xlu0 %v633, 64
  %v637 = vpop.permute.xlu0 %636
  %v639 = vmul.f32 %v632, %v637
  %641 = vrot.lane.b32.xlu0 %v639, 32
  %v642 = vpop.permute.xlu0 %641
  %v644 = vadd.f32 %v634, %v642
  %v645 = vtanh.pop %v644
  %647 = vrot.lane.b32.xlu0 %v645, 64
  %v648 = vpop.permute.xlu0 %647
  %v650 = vmul.f32 %v632, %v648
  %652 = vrot.lane.b32.xlu0 %v650, 32
  %v653 = vpop.permute.xlu0 %652
  %s655 = scalar_lea.vmem [#allocation3], 56
  %656 = vst.msk [vmem:[%s655] sm:$0xff] %vm36, %v653
  %v657 = vld [vmem:[#allocation3] sm:$0xff]
  %v658 = vld [vmem:[#allocation3 + $0x8] sm:$0xff]
  %v659 = vld [vmem:[#allocation3 + $0x10] sm:$0xff]
  %v660 = vld [vmem:[#allocation3 + $0x18] sm:$0xff]
  %v661 = vld [vmem:[#allocation3 + $0x20] sm:$0xff]
  %v662 = vld [vmem:[#allocation3 + $0x28] sm:$0xff]
  %v663 = vld [vmem:[#allocation3 + $0x30] sm:$0xff]
  %v664 = vld [vmem:[#allocation3 + $0x38] sm:$0xff]
  %v665 = vld [vmem:[%s2] sm:$0xff]
  %v666 = vld [vmem:[%s2 + $0x8] sm:$0xff]
  %v667 = vld [vmem:[%s2 + $0x10] sm:$0xff]
  %v668 = vld [vmem:[%s2 + $0x18] sm:$0xff]
  %s669 = scalar_lea.vmem %s4, 1
  %v670 = vld [vmem:[%s669] sm:$0x1]
  %v672 = vperm.slane %v670, 0
  %v675 = vsel %vm36, %v657, 0
  %v678 = vsel %vm36, %v658, 0
  %v681 = vsel %vm36, %v659, 0
  %v684 = vsel %vm36, %v660, 0
  %v687 = vsel %vm36, %v661, 0
  %v690 = vsel %vm36, %v662, 0
  %v693 = vsel %vm36, %v663, 0
  %v696 = vsel %vm36, %v664, 0
  %698 = vmatpush.msra.mxu0 0.0
  %699 = vmatpush.msra.mxu0 0.0
  %700 = vmatpush.msra.mxu0 0.0
  %701 = vmatpush.msra.mxu0 0.0
  %702 = vmatpush.msra.mxu0 0.0
  %703 = vmatpush.msra.mxu0 0.0
  %704 = vmatpush.msra.mxu0 0.0
  %705 = vmatpush.msra.mxu0 0.0
  %706 = vmatpush.msra.mxu0 0.0
  %707 = vmatpush.msra.mxu0 0.0
  %708 = vmatpush.msra.mxu0 0.0
  %709 = vmatpush.msra.mxu0 0.0
  %710 = vmatpush.msra.mxu0 %v668
  %711 = vmatpush.msra.mxu0 %v667
  %712 = vmatpush.msra.mxu0 %v666
  %713 = vmatpush.msra.mxu0 %v665
  %714 = vmatmul.f32.gmra.mxu0 %v675
  %v715 = vpop.f32.mrf.mxu0
  %v716 = vadd.f32 %v672, %v715
  %717 = vmatmul.f32.gmra.mxu0 %v678
  %v718 = vpop.f32.mrf.mxu0
  %v719 = vadd.f32 %v672, %v718
  %720 = vmatmul.f32.gmra.mxu0 %v681
  %v721 = vpop.f32.mrf.mxu0
  %v722 = vadd.f32 %v672, %v721
  %723 = vmatmul.f32.gmra.mxu0 %v684
  %v724 = vpop.f32.mrf.mxu0
  %v725 = vadd.f32 %v672, %v724
  %726 = vmatmul.f32.gmra.mxu0 %v687
  %v727 = vpop.f32.mrf.mxu0
  %v728 = vadd.f32 %v672, %v727
  %729 = vmatmul.f32.gmra.mxu0 %v690
  %v730 = vpop.f32.mrf.mxu0
  %v731 = vadd.f32 %v672, %v730
  %732 = vmatmul.f32.gmra.mxu0 %v693
  %v733 = vpop.f32.mrf.mxu0
  %v734 = vadd.f32 %v672, %v733
  %735 = vmatmul.f32.gmra.mxu0 %v696
  %v736 = vpop.f32.mrf.mxu0
  %v737 = vadd.f32 %v672, %v736
  %738 = vdwg.mxu0
  %739 = vst [vmem:[#allocation2] sm:$0xff] %v716
  %740 = vst [vmem:[#allocation2 + $0x8] sm:$0xff] %v719
  %741 = vst [vmem:[#allocation2 + $0x10] sm:$0xff] %v722
  %742 = vst [vmem:[#allocation2 + $0x18] sm:$0xff] %v725
  %743 = vst [vmem:[#allocation2 + $0x20] sm:$0xff] %v728
  %744 = vst [vmem:[#allocation2 + $0x28] sm:$0xff] %v731
  %745 = vst [vmem:[#allocation2 + $0x30] sm:$0xff] %v734
  %746 = vst [vmem:[#allocation2 + $0x38] sm:$0xff] %v737
  %s747 = scalar_lea.vmem %s3, 32
  %v748 = vld [vmem:[%s747] sm:$0xff]
  %v749 = vld [vmem:[%s747 + $0x8] sm:$0xff]
  %v750 = vld [vmem:[%s747 + $0x10] sm:$0xff]
  %v751 = vld [vmem:[%s747 + $0x18] sm:$0xff]
  %v752 = vld [vmem:[#allocation2] sm:$0xff]
  %753 = vmatpush.msra.mxu0 0.0
  %754 = vmatpush.msra.mxu0 0.0
  %755 = vmatpush.msra.mxu0 0.0
  %756 = vmatpush.msra.mxu0 0.0
  %757 = vmatpush.msra.mxu0 0.0
  %758 = vmatpush.msra.mxu0 0.0
  %759 = vmatpush.msra.mxu0 0.0
  %760 = vmatpush.msra.mxu0 0.0
  %761 = vmatpush.msra.mxu0 0.0
  %762 = vmatpush.msra.mxu0 0.0
  %763 = vmatpush.msra.mxu0 0.0
  %764 = vmatpush.msra.mxu0 0.0
  %765 = vmatpush.msra.mxu0 %v751
  %766 = vmatpush.msra.mxu0 %v750
  %767 = vmatpush.msra.mxu0 %v749
  %768 = vmatpush.msra.mxu0 %v748
  %769 = vmatmul.f32.gmra.mxu0 %v116
  %v770 = vpop.f32.mrf.mxu0
  %v771 = vadd.f32 0.0, %v770
  %772 = vdwg.mxu0
  %v773 = vadd.f32 %v752, %v771
  %v774 = vxor.u32 %v773, 2147483648
  %v775 = vmul.f32 %v774, 1.442695
  %v776 = vpow.pop %v775
  %v777 = vadd.f32 %v776, 1.0
  %v778 = vrcp.pop %v777
  %v779 = vmul.f32 %v777, %v778
  %v780 = vsub.f32 1.0, %v779
  %v781 = vmul.f32 %v778, %v780
  %v782 = vadd.f32 %v778, %v781
  %vm783 = vweird.f32 %v777
  %vm784 = vweird.f32 %v778
  %vm785 = vmor %vm783, %vm784
  %v786 = vsel %vm785, %v778, %v782
  %v787 = vand.u32 2147483647, %v777
  %vm788 = vcmp.eq.f32.partialorder %v787, 8.507059e+37
  %v789 = vand.u32 %v777, 2147483648
  %v790 = vor.u32 1.1754944e-38, %v789
  %v791 = vsel %vm788, %v790, %v786
  %v792 = vmul.f32 1.0, %v791
  %v793 = vtanh.pop %v773
  %v794 = vmul.f32 %v792, 0.0
  %796 = vrot.lane.b32.xlu0 %v793, 64
  %v797 = vpop.permute.xlu0 %796
  %v799 = vmul.f32 %v792, %v797
  %801 = vrot.lane.b32.xlu0 %v799, 32
  %v802 = vpop.permute.xlu0 %801
  %v804 = vadd.f32 %v794, %v802
  %v805 = vtanh.pop %v804
  %807 = vrot.lane.b32.xlu0 %v805, 64
  %v808 = vpop.permute.xlu0 %807
  %v810 = vmul.f32 %v792, %v808
  %812 = vrot.lane.b32.xlu0 %v810, 32
  %v813 = vpop.permute.xlu0 %812
  %815 = vst.msk [vmem:[#allocation3] sm:$0xff] %vm36, %v813
  %v816 = vld [vmem:[%s181] sm:$0xff]
  %v817 = vsel %vm36, %v813, 0
  %819 = vmatpush.msra.mxu0 0.0
  %820 = vmatpush.msra.mxu0 0.0
  %821 = vmatpush.msra.mxu0 0.0
  %822 = vmatpush.msra.mxu0 0.0
  %823 = vmatpush.msra.mxu0 0.0
  %824 = vmatpush.msra.mxu0 0.0
  %825 = vmatpush.msra.mxu0 0.0
  %826 = vmatpush.msra.mxu0 0.0
  %827 = vmatpush.msra.mxu0 0.0
  %828 = vmatpush.msra.mxu0 0.0
  %829 = vmatpush.msra.mxu0 0.0
  %830 = vmatpush.msra.mxu0 0.0
  %831 = vmatpush.msra.mxu0 %v751
  %832 = vmatpush.msra.mxu0 %v750
  %833 = vmatpush.msra.mxu0 %v749
  %834 = vmatpush.msra.mxu0 %v748
  %835 = vmatmul.f32.gmra.mxu0 %v817
  %v836 = vpop.f32.mrf.mxu0
  %v837 = vadd.f32 0.0, %v836
  %838 = vdwg.mxu0
  %v839 = vadd.f32 %v816, %v837
  %v840 = vxor.u32 %v839, 2147483648
  %v841 = vmul.f32 %v840, 1.442695
  %v842 = vpow.pop %v841
  %v843 = vadd.f32 %v842, 1.0
  %v844 = vrcp.pop %v843
  %v845 = vmul.f32 %v843, %v844
  %v846 = vsub.f32 1.0, %v845
  %v847 = vmul.f32 %v844, %v846
  %v848 = vadd.f32 %v844, %v847
  %vm849 = vweird.f32 %v843
  %vm850 = vweird.f32 %v844
  %vm851 = vmor %vm849, %vm850
  %v852 = vsel %vm851, %v844, %v848
  %v853 = vand.u32 2147483647, %v843
  %vm854 = vcmp.eq.f32.partialorder %v853, 8.507059e+37
  %v855 = vand.u32 %v843, 2147483648
  %v856 = vor.u32 1.1754944e-38, %v855
  %v857 = vsel %vm854, %v856, %v852
  %v858 = vmul.f32 1.0, %v857
  %v859 = vtanh.pop %v839
  %v860 = vmul.f32 %v858, %v804
  %862 = vrot.lane.b32.xlu0 %v859, 64
  %v863 = vpop.permute.xlu0 %862
  %v865 = vmul.f32 %v858, %v863
  %867 = vrot.lane.b32.xlu0 %v865, 32
  %v868 = vpop.permute.xlu0 %867
  %v870 = vadd.f32 %v860, %v868
  %v871 = vtanh.pop %v870
  %873 = vrot.lane.b32.xlu0 %v871, 64
  %v874 = vpop.permute.xlu0 %873
  %v876 = vmul.f32 %v858, %v874
  %878 = vrot.lane.b32.xlu0 %v876, 32
  %v879 = vpop.permute.xlu0 %878
  %881 = vst.msk [vmem:[%s247] sm:$0xff] %vm36, %v879
  %v882 = vld [vmem:[%s249] sm:$0xff]
  %v883 = vsel %vm36, %v879, 0
  %885 = vmatpush.msra.mxu0 0.0
  %886 = vmatpush.msra.mxu0 0.0
  %887 = vmatpush.msra.mxu0 0.0
  %888 = vmatpush.msra.mxu0 0.0
  %889 = vmatpush.msra.mxu0 0.0
  %890 = vmatpush.msra.mxu0 0.0
  %891 = vmatpush.msra.mxu0 0.0
  %892 = vmatpush.msra.mxu0 0.0
  %893 = vmatpush.msra.mxu0 0.0
  %894 = vmatpush.msra.mxu0 0.0
  %895 = vmatpush.msra.mxu0 0.0
  %896 = vmatpush.msra.mxu0 0.0
  %897 = vmatpush.msra.mxu0 %v751
  %898 = vmatpush.msra.mxu0 %v750
  %899 = vmatpush.msra.mxu0 %v749
  %900 = vmatpush.msra.mxu0 %v748
  %901 = vmatmul.f32.gmra.mxu0 %v883
  %v902 = vpop.f32.mrf.mxu0
  %v903 = vadd.f32 0.0, %v902
  %904 = vdwg.mxu0
  %v905 = vadd.f32 %v882, %v903
  %v906 = vxor.u32 %v905, 2147483648
  %v907 = vmul.f32 %v906, 1.442695
  %v908 = vpow.pop %v907
  %v909 = vadd.f32 %v908, 1.0
  %v910 = vrcp.pop %v909
  %v911 = vmul.f32 %v909, %v910
  %v912 = vsub.f32 1.0, %v911
  %v913 = vmul.f32 %v910, %v912
  %v914 = vadd.f32 %v910, %v913
  %vm915 = vweird.f32 %v909
  %vm916 = vweird.f32 %v910
  %vm917 = vmor %vm915, %vm916
  %v918 = vsel %vm917, %v910, %v914
  %v919 = vand.u32 2147483647, %v909
  %vm920 = vcmp.eq.f32.partialorder %v919, 8.507059e+37
  %v921 = vand.u32 %v909, 2147483648
  %v922 = vor.u32 1.1754944e-38, %v921
  %v923 = vsel %vm920, %v922, %v918
  %v924 = vmul.f32 1.0, %v923
  %v925 = vtanh.pop %v905
  %v926 = vmul.f32 %v924, %v870
  %928 = vrot.lane.b32.xlu0 %v925, 64
  %v929 = vpop.permute.xlu0 %928
  %v931 = vmul.f32 %v924, %v929
  %933 = vrot.lane.b32.xlu0 %v931, 32
  %v934 = vpop.permute.xlu0 %933
  %v936 = vadd.f32 %v926, %v934
  %v937 = vtanh.pop %v936
  %939 = vrot.lane.b32.xlu0 %v937, 64
  %v940 = vpop.permute.xlu0 %939
  %v942 = vmul.f32 %v924, %v940
  %944 = vrot.lane.b32.xlu0 %v942, 32
  %v945 = vpop.permute.xlu0 %944
  %947 = vst.msk [vmem:[%s315] sm:$0xff] %vm36, %v945
  %v948 = vld [vmem:[%s317] sm:$0xff]
  %v949 = vsel %vm36, %v945, 0
  %951 = vmatpush.msra.mxu0 0.0
  %952 = vmatpush.msra.mxu0 0.0
  %953 = vmatpush.msra.mxu0 0.0
  %954 = vmatpush.msra.mxu0 0.0
  %955 = vmatpush.msra.mxu0 0.0
  %956 = vmatpush.msra.mxu0 0.0
  %957 = vmatpush.msra.mxu0 0.0
  %958 = vmatpush.msra.mxu0 0.0
  %959 = vmatpush.msra.mxu0 0.0
  %960 = vmatpush.msra.mxu0 0.0
  %961 = vmatpush.msra.mxu0 0.0
  %962 = vmatpush.msra.mxu0 0.0
  %963 = vmatpush.msra.mxu0 %v751
  %964 = vmatpush.msra.mxu0 %v750
  %965 = vmatpush.msra.mxu0 %v749
  %966 = vmatpush.msra.mxu0 %v748
  %967 = vmatmul.f32.gmra.mxu0 %v949
  %v968 = vpop.f32.mrf.mxu0
  %v969 = vadd.f32 0.0, %v968
  %970 = vdwg.mxu0
  %v971 = vadd.f32 %v948, %v969
  %v972 = vxor.u32 %v971, 2147483648
  %v973 = vmul.f32 %v972, 1.442695
  %v974 = vpow.pop %v973
  %v975 = vadd.f32 %v974, 1.0
  %v976 = vrcp.pop %v975
  %v977 = vmul.f32 %v975, %v976
  %v978 = vsub.f32 1.0, %v977
  %v979 = vmul.f32 %v976, %v978
  %v980 = vadd.f32 %v976, %v979
  %vm981 = vweird.f32 %v975
  %vm982 = vweird.f32 %v976
  %vm983 = vmor %vm981, %vm982
  %v984 = vsel %vm983, %v976, %v980
  %v985 = vand.u32 2147483647, %v975
  %vm986 = vcmp.eq.f32.partialorder %v985, 8.507059e+37
  %v987 = vand.u32 %v975, 2147483648
  %v988 = vor.u32 1.1754944e-38, %v987
  %v989 = vsel %vm986, %v988, %v984
  %v990 = vmul.f32 1.0, %v989
  %v991 = vtanh.pop %v971
  %v992 = vmul.f32 %v990, %v936
  %994 = vrot.lane.b32.xlu0 %v991, 64
  %v995 = vpop.permute.xlu0 %994
  %v997 = vmul.f32 %v990, %v995
  %999 = vrot.lane.b32.xlu0 %v997, 32
  %v1000 = vpop.permute.xlu0 %999
  %v1002 = vadd.f32 %v992, %v1000
  %v1003 = vtanh.pop %v1002
  %1005 = vrot.lane.b32.xlu0 %v1003, 64
  %v1006 = vpop.permute.xlu0 %1005
  %v1008 = vmul.f32 %v990, %v1006
  %1010 = vrot.lane.b32.xlu0 %v1008, 32
  %v1011 = vpop.permute.xlu0 %1010
  %1013 = vst.msk [vmem:[%s383] sm:$0xff] %vm36, %v1011
  %v1014 = vld [vmem:[%s385] sm:$0xff]
  %v1015 = vsel %vm36, %v1011, 0
  %1017 = vmatpush.msra.mxu0 0.0
  %1018 = vmatpush.msra.mxu0 0.0
  %1019 = vmatpush.msra.mxu0 0.0
  %1020 = vmatpush.msra.mxu0 0.0
  %1021 = vmatpush.msra.mxu0 0.0
  %1022 = vmatpush.msra.mxu0 0.0
  %1023 = vmatpush.msra.mxu0 0.0
  %1024 = vmatpush.msra.mxu0 0.0
  %1025 = vmatpush.msra.mxu0 0.0
  %1026 = vmatpush.msra.mxu0 0.0
  %1027 = vmatpush.msra.mxu0 0.0
  %1028 = vmatpush.msra.mxu0 0.0
  %1029 = vmatpush.msra.mxu0 %v751
  %1030 = vmatpush.msra.mxu0 %v750
  %1031 = vmatpush.msra.mxu0 %v749
  %1032 = vmatpush.msra.mxu0 %v748
  %1033 = vmatmul.f32.gmra.mxu0 %v1015
  %v1034 = vpop.f32.mrf.mxu0
  %v1035 = vadd.f32 0.0, %v1034
  %1036 = vdwg.mxu0
  %v1037 = vadd.f32 %v1014, %v1035
  %v1038 = vxor.u32 %v1037, 2147483648
  %v1039 = vmul.f32 %v1038, 1.442695
  %v1040 = vpow.pop %v1039
  %v1041 = vadd.f32 %v1040, 1.0
  %v1042 = vrcp.pop %v1041
  %v1043 = vmul.f32 %v1041, %v1042
  %v1044 = vsub.f32 1.0, %v1043
  %v1045 = vmul.f32 %v1042, %v1044
  %v1046 = vadd.f32 %v1042, %v1045
  %vm1047 = vweird.f32 %v1041
  %vm1048 = vweird.f32 %v1042
  %vm1049 = vmor %vm1047, %vm1048
  %v1050 = vsel %vm1049, %v1042, %v1046
  %v1051 = vand.u32 2147483647, %v1041
  %vm1052 = vcmp.eq.f32.partialorder %v1051, 8.507059e+37
  %v1053 = vand.u32 %v1041, 2147483648
  %v1054 = vor.u32 1.1754944e-38, %v1053
  %v1055 = vsel %vm1052, %v1054, %v1050
  %v1056 = vmul.f32 1.0, %v1055
  %v1057 = vtanh.pop %v1037
  %v1058 = vmul.f32 %v1056, %v1002
  %1060 = vrot.lane.b32.xlu0 %v1057, 64
  %v1061 = vpop.permute.xlu0 %1060
  %v1063 = vmul.f32 %v1056, %v1061
  %1065 = vrot.lane.b32.xlu0 %v1063, 32
  %v1066 = vpop.permute.xlu0 %1065
  %v1068 = vadd.f32 %v1058, %v1066
  %v1069 = vtanh.pop %v1068
  %1071 = vrot.lane.b32.xlu0 %v1069, 64
  %v1072 = vpop.permute.xlu0 %1071
  %v1074 = vmul.f32 %v1056, %v1072
  %1076 = vrot.lane.b32.xlu0 %v1074, 32
  %v1077 = vpop.permute.xlu0 %1076
  %1079 = vst.msk [vmem:[%s451] sm:$0xff] %vm36, %v1077
  %v1080 = vld [vmem:[%s453] sm:$0xff]
  %v1081 = vsel %vm36, %v1077, 0
  %1083 = vmatpush.msra.mxu0 0.0
  %1084 = vmatpush.msra.mxu0 0.0
  %1085 = vmatpush.msra.mxu0 0.0
  %1086 = vmatpush.msra.mxu0 0.0
  %1087 = vmatpush.msra.mxu0 0.0
  %1088 = vmatpush.msra.mxu0 0.0
  %1089 = vmatpush.msra.mxu0 0.0
  %1090 = vmatpush.msra.mxu0 0.0
  %1091 = vmatpush.msra.mxu0 0.0
  %1092 = vmatpush.msra.mxu0 0.0
  %1093 = vmatpush.msra.mxu0 0.0
  %1094 = vmatpush.msra.mxu0 0.0
  %1095 = vmatpush.msra.mxu0 %v751
  %1096 = vmatpush.msra.mxu0 %v750
  %1097 = vmatpush.msra.mxu0 %v749
  %1098 = vmatpush.msra.mxu0 %v748
  %1099 = vmatmul.f32.gmra.mxu0 %v1081
  %v1100 = vpop.f32.mrf.mxu0
  %v1101 = vadd.f32 0.0, %v1100
  %1102 = vdwg.mxu0
  %v1103 = vadd.f32 %v1080, %v1101
  %v1104 = vxor.u32 %v1103, 2147483648
  %v1105 = vmul.f32 %v1104, 1.442695
  %v1106 = vpow.pop %v1105
  %v1107 = vadd.f32 %v1106, 1.0
  %v1108 = vrcp.pop %v1107
  %v1109 = vmul.f32 %v1107, %v1108
  %v1110 = vsub.f32 1.0, %v1109
  %v1111 = vmul.f32 %v1108, %v1110
  %v1112 = vadd.f32 %v1108, %v1111
  %vm1113 = vweird.f32 %v1107
  %vm1114 = vweird.f32 %v1108
  %vm1115 = vmor %vm1113, %vm1114
  %v1116 = vsel %vm1115, %v1108, %v1112
  %v1117 = vand.u32 2147483647, %v1107
  %vm1118 = vcmp.eq.f32.partialorder %v1117, 8.507059e+37
  %v1119 = vand.u32 %v1107, 2147483648
  %v1120 = vor.u32 1.1754944e-38, %v1119
  %v1121 = vsel %vm1118, %v1120, %v1116
  %v1122 = vmul.f32 1.0, %v1121
  %v1123 = vtanh.pop %v1103
  %v1124 = vmul.f32 %v1122, %v1068
  %1126 = vrot.lane.b32.xlu0 %v1123, 64
  %v1127 = vpop.permute.xlu0 %1126
  %v1129 = vmul.f32 %v1122, %v1127
  %1131 = vrot.lane.b32.xlu0 %v1129, 32
  %v1132 = vpop.permute.xlu0 %1131
  %v1134 = vadd.f32 %v1124, %v1132
  %v1135 = vtanh.pop %v1134
  %1137 = vrot.lane.b32.xlu0 %v1135, 64
  %v1138 = vpop.permute.xlu0 %1137
  %v1140 = vmul.f32 %v1122, %v1138
  %1142 = vrot.lane.b32.xlu0 %v1140, 32
  %v1143 = vpop.permute.xlu0 %1142
  %1145 = vst.msk [vmem:[%s519] sm:$0xff] %vm36, %v1143
  %v1146 = vld [vmem:[%s521] sm:$0xff]
  %v1147 = vsel %vm36, %v1143, 0
  %1149 = vmatpush.msra.mxu0 0.0
  %1150 = vmatpush.msra.mxu0 0.0
  %1151 = vmatpush.msra.mxu0 0.0
  %1152 = vmatpush.msra.mxu0 0.0
  %1153 = vmatpush.msra.mxu0 0.0
  %1154 = vmatpush.msra.mxu0 0.0
  %1155 = vmatpush.msra.mxu0 0.0
  %1156 = vmatpush.msra.mxu0 0.0
  %1157 = vmatpush.msra.mxu0 0.0
  %1158 = vmatpush.msra.mxu0 0.0
  %1159 = vmatpush.msra.mxu0 0.0
  %1160 = vmatpush.msra.mxu0 0.0
  %1161 = vmatpush.msra.mxu0 %v751
  %1162 = vmatpush.msra.mxu0 %v750
  %1163 = vmatpush.msra.mxu0 %v749
  %1164 = vmatpush.msra.mxu0 %v748
  %1165 = vmatmul.f32.gmra.mxu0 %v1147
  %v1166 = vpop.f32.mrf.mxu0
  %v1167 = vadd.f32 0.0, %v1166
  %1168 = vdwg.mxu0
  %v1169 = vadd.f32 %v1146, %v1167
  %v1170 = vxor.u32 %v1169, 2147483648
  %v1171 = vmul.f32 %v1170, 1.442695
  %v1172 = vpow.pop %v1171
  %v1173 = vadd.f32 %v1172, 1.0
  %v1174 = vrcp.pop %v1173
  %v1175 = vmul.f32 %v1173, %v1174
  %v1176 = vsub.f32 1.0, %v1175
  %v1177 = vmul.f32 %v1174, %v1176
  %v1178 = vadd.f32 %v1174, %v1177
  %vm1179 = vweird.f32 %v1173
  %vm1180 = vweird.f32 %v1174
  %vm1181 = vmor %vm1179, %vm1180
  %v1182 = vsel %vm1181, %v1174, %v1178
  %v1183 = vand.u32 2147483647, %v1173
  %vm1184 = vcmp.eq.f32.partialorder %v1183, 8.507059e+37
  %v1185 = vand.u32 %v1173, 2147483648
  %v1186 = vor.u32 1.1754944e-38, %v1185
  %v1187 = vsel %vm1184, %v1186, %v1182
  %v1188 = vmul.f32 1.0, %v1187
  %v1189 = vtanh.pop %v1169
  %v1190 = vmul.f32 %v1188, %v1134
  %1192 = vrot.lane.b32.xlu0 %v1189, 64
  %v1193 = vpop.permute.xlu0 %1192
  %v1195 = vmul.f32 %v1188, %v1193
  %1197 = vrot.lane.b32.xlu0 %v1195, 32
  %v1198 = vpop.permute.xlu0 %1197
  %v1200 = vadd.f32 %v1190, %v1198
  %v1201 = vtanh.pop %v1200
  %1203 = vrot.lane.b32.xlu0 %v1201, 64
  %v1204 = vpop.permute.xlu0 %1203
  %v1206 = vmul.f32 %v1188, %v1204
  %1208 = vrot.lane.b32.xlu0 %v1206, 32
  %v1209 = vpop.permute.xlu0 %1208
  %1211 = vst.msk [vmem:[%s587] sm:$0xff] %vm36, %v1209
  %v1212 = vld [vmem:[%s589] sm:$0xff]
  %v1213 = vsel %vm36, %v1209, 0
  %1215 = vmatpush.msra.mxu0 0.0
  %1216 = vmatpush.msra.mxu0 0.0
  %1217 = vmatpush.msra.mxu0 0.0
  %1218 = vmatpush.msra.mxu0 0.0
  %1219 = vmatpush.msra.mxu0 0.0
  %1220 = vmatpush.msra.mxu0 0.0
  %1221 = vmatpush.msra.mxu0 0.0
  %1222 = vmatpush.msra.mxu0 0.0
  %1223 = vmatpush.msra.mxu0 0.0
  %1224 = vmatpush.msra.mxu0 0.0
  %1225 = vmatpush.msra.mxu0 0.0
  %1226 = vmatpush.msra.mxu0 0.0
  %1227 = vmatpush.msra.mxu0 %v751
  %1228 = vmatpush.msra.mxu0 %v750
  %1229 = vmatpush.msra.mxu0 %v749
  %1230 = vmatpush.msra.mxu0 %v748
  %1231 = vmatmul.f32.gmra.mxu0 %v1213
  %v1232 = vpop.f32.mrf.mxu0
  %v1233 = vadd.f32 0.0, %v1232
  %1234 = vdwg.mxu0
  %v1235 = vadd.f32 %v1212, %v1233
  %v1236 = vxor.u32 %v1235, 2147483648
  %v1237 = vmul.f32 %v1236, 1.442695
  %v1238 = vpow.pop %v1237
  %v1239 = vadd.f32 %v1238, 1.0
  %v1240 = vrcp.pop %v1239
  %v1241 = vmul.f32 %v1239, %v1240
  %v1242 = vsub.f32 1.0, %v1241
  %v1243 = vmul.f32 %v1240, %v1242
  %v1244 = vadd.f32 %v1240, %v1243
  %vm1245 = vweird.f32 %v1239
  %vm1246 = vweird.f32 %v1240
  %vm1247 = vmor %vm1245, %vm1246
  %v1248 = vsel %vm1247, %v1240, %v1244
  %v1249 = vand.u32 2147483647, %v1239
  %vm1250 = vcmp.eq.f32.partialorder %v1249, 8.507059e+37
  %v1251 = vand.u32 %v1239, 2147483648
  %v1252 = vor.u32 1.1754944e-38, %v1251
  %v1253 = vsel %vm1250, %v1252, %v1248
  %v1254 = vmul.f32 1.0, %v1253
  %v1255 = vtanh.pop %v1235
  %v1256 = vmul.f32 %v1254, %v1200
  %1258 = vrot.lane.b32.xlu0 %v1255, 64
  %v1259 = vpop.permute.xlu0 %1258
  %v1261 = vmul.f32 %v1254, %v1259
  %1263 = vrot.lane.b32.xlu0 %v1261, 32
  %v1264 = vpop.permute.xlu0 %1263
  %v1266 = vadd.f32 %v1256, %v1264
  %v1267 = vtanh.pop %v1266
  %1269 = vrot.lane.b32.xlu0 %v1267, 64
  %v1270 = vpop.permute.xlu0 %1269
  %v1272 = vmul.f32 %v1254, %v1270
  %1274 = vrot.lane.b32.xlu0 %v1272, 32
  %v1275 = vpop.permute.xlu0 %1274
  %1277 = vst.msk [vmem:[%s655] sm:$0xff] %vm36, %v1275
  %v1278 = vld [vmem:[#allocation3] sm:$0xff]
  %v1279 = vld [vmem:[#allocation3 + $0x8] sm:$0xff]
  %v1280 = vld [vmem:[#allocation3 + $0x10] sm:$0xff]
  %v1281 = vld [vmem:[#allocation3 + $0x18] sm:$0xff]
  %v1282 = vld [vmem:[#allocation3 + $0x20] sm:$0xff]
  %v1283 = vld [vmem:[#allocation3 + $0x28] sm:$0xff]
  %v1284 = vld [vmem:[#allocation3 + $0x30] sm:$0xff]
  %v1285 = vld [vmem:[#allocation3 + $0x38] sm:$0xff]
  %1286 = vst.msk [vmem:[%s5] sm:$0xff] %vm36, %v1278
  %1287 = vst.msk [vmem:[%s5 + $0x8] sm:$0xff] %vm36, %v1279
  %1288 = vst.msk [vmem:[%s5 + $0x10] sm:$0xff] %vm36, %v1280
  %1289 = vst.msk [vmem:[%s5 + $0x18] sm:$0xff] %vm36, %v1281
  %1290 = vst.msk [vmem:[%s5 + $0x20] sm:$0xff] %vm36, %v1282
  %1291 = vst.msk [vmem:[%s5 + $0x28] sm:$0xff] %vm36, %v1283
  %1292 = vst.msk [vmem:[%s5 + $0x30] sm:$0xff] %vm36, %v1284
  %1293 = vst.msk [vmem:[%s5 + $0x38] sm:$0xff] %vm36, %v1285
  // Predicated region
  $region22: #{decoder_forward.2} parent=0 // pred_check
    _
  $region23: #{decoder_forward.2} parent=0 // pred_check_branch
    %1295 = sbr.rel (0) target = $region25
  $region24: #{decoder_forward.2} parent=0 // pred_region
    _
  $region25: #{decoder_forward.2} parent=0 // pred_fallthru
    _
  // Predicated region
  $region26: #{decoder_forward.2} parent=0 // pred_check
    _
  $region27: #{decoder_forward.2} parent=0 // pred_check_branch
    %1297 = sbr.rel (0) target = $region29
  $region28: #{decoder_forward.2} parent=0 // pred_region
    _
  $region29: #{decoder_forward.2} parent=0 // pred_fallthru
    _

</llo_original>
